<compile_context>
chip_gen: v7x
topology: tpu7x:2x2x1
jax: 0.10.0
libtpu: 0.0.40
codegen_flags: <defaults>
</compile_context>

<pallas_src>
import functools
import math

import jax
import jax.numpy as jnp
from jax.experimental import pallas as pl
from jax.experimental.pallas import tpu as pltpu


def _entlm_head_kernel(feat_ref, wd_ref, bd_ref, gamma_ref, beta_ref, wv_ref,
                       out_ref, y_ref, *, eps):
    """grid = (row tiles [parallel], vocab tiles [arbitrary, innermost])."""

    # ---- once per row tile (vocab tile 0): dense -> GELU -> LayerNorm ------
    @pl.when(pl.program_id(1) == 0)
    def _():
        # dense: feat (tm, H_in) x Wd (H_out, H_in), contract H_in (NT matmul,
        # MXU-native, no wrapper-side transpose of the weight).
        x = jax.lax.dot_general(
            feat_ref[...], wd_ref[...],
            dimension_numbers=(((1,), (1,)), ((), ())),
            preferred_element_type=jnp.float32)
        x = x + bd_ref[...]                       # (1, H) broadcasts over rows
        # exact (erf) GELU, BERT-style
        x = 0.5 * x * (1.0 + jax.lax.erf(x * (1.0 / math.sqrt(2.0))))
        # LayerNorm over last dim (stats in f32)
        mean = jnp.mean(x, axis=-1, keepdims=True)
        centered = x - mean
        var = jnp.mean(centered * centered, axis=-1, keepdims=True)
        y = centered * jax.lax.rsqrt(var + eps) * gamma_ref[...] + beta_ref[...]
        # single f32 -> matmul-dtype cast; cached and reused for every vocab tile
        y_ref[...] = y.astype(y_ref.dtype)

    # ---- every (row tile, vocab tile): (tm, H) x (tn, H) NT on the MXU -----
    out_ref[...] = jax.lax.dot_general(
        y_ref[...], wv_ref[...],
        dimension_numbers=(((1,), (1,)), ((), ())),
        preferred_element_type=jnp.float32).astype(out_ref.dtype)


def _round_up(x, m):
    return (x + m - 1) // m * m


def _sublane_multiple(dtype):
    # Native sublane packing per vreg: f32 -> 8 rows, bf16 -> 16, int8/fp8 -> 32.
    return max(8, 32 // jnp.dtype(dtype).itemsize)


def _default_row_tile():
    kind = ""
    try:
        kind = jax.devices()[0].device_kind.lower()
    except Exception:
        pass
    if "v5" in kind:
        return 256    # v5e: already near roofline balance; bigger tm buys little
    if "v7" in kind:
        return 512    # v7x: 64 MiB VMEM/TC; keeps grid_m >= 2 so both TCs work
    return 1024       # v6e & default: big tm -> vocab weight re-read few times


def _vmem_limit_bytes(tm, tn, H, feat_dt, wd_dt, wv_dt, out_dt, y_dt):
    # Worst-case (double-buffered) footprint of the chosen tiles + headroom.
    need = (2 * tm * H * jnp.dtype(feat_dt).itemsize      # feature tiles
            + 2 * H * H * jnp.dtype(wd_dt).itemsize       # dense weight (<=2 bufs)
            + 6 * H * 4                                    # bias / gamma / beta
            + 2 * tn * H * jnp.dtype(wv_dt).itemsize      # vocab weight tiles
            + 2 * tm * tn * jnp.dtype(out_dt).itemsize    # output tiles
            + tm * H * jnp.dtype(y_dt).itemsize)          # cached activations
    return max(32 << 20, min(int(need * 1.25) + (8 << 20), 100 << 20))


def entlm_head(features, dense_w, dense_b, ln_gamma, ln_beta, weight,
               *, eps=1e-12, tm=None, tn=512, out_dtype=None):
    """features: (B, S, H); dense_w: (H, H) PyTorch (out, in) layout;
    dense_b / ln_gamma / ln_beta: (H,); weight: (V, H)  -> logits (B, S, V)."""
    B, S, H = features.shape
    V, Hw = weight.shape
    assert Hw == H and dense_w.shape == (H, H)
    M = B * S
    if out_dtype is None:
        out_dtype = features.dtype
    if tm is None:
        tm = _default_row_tile()

    feat2d = features.reshape(M, H)
    bd = dense_b.reshape(1, H).astype(jnp.float32)
    gamma = ln_gamma.reshape(1, H).astype(jnp.float32)
    beta = ln_beta.reshape(1, H).astype(jnp.float32)

    # Tile sizes: clip to the problem; keep native (sublane, lane) alignment.
    sub = max(_sublane_multiple(feat2d.dtype), _sublane_multiple(weight.dtype))
    tm_eff = _round_up(min(tm, _round_up(M, sub)), sub)
    tn_eff = _round_up(min(tn, _round_up(V, 128)), 128)
    grid = (pl.cdiv(M, tm_eff), pl.cdiv(V, tn_eff))

    kernel = functools.partial(_entlm_head_kernel, eps=eps)
    y_dtype = weight.dtype        # cache activations in the vocab-matmul dtype

    cost = pl.CostEstimate(
        flops=2 * M * H * H + 2 * M * H * V,
        transcendentals=M * H,
        bytes_accessed=(feat2d.size * feat2d.dtype.itemsize
                        + dense_w.size * dense_w.dtype.itemsize
                        # vocab weight is streamed once per row tile:
                        + weight.size * weight.dtype.itemsize * grid[0]
                        + M * V * jnp.dtype(out_dtype).itemsize),
    )

    compiler_params = pltpu.CompilerParams(
        dimension_semantics=("parallel", "arbitrary"),
        vmem_limit_bytes=_vmem_limit_bytes(
            tm_eff, tn_eff, H, feat2d.dtype, dense_w.dtype, weight.dtype,
            out_dtype, y_dtype),
    )

    def build(const_pipeline_mode):
        ck = ({} if const_pipeline_mode is None
              else dict(pipeline_mode=const_pipeline_mode))
        return pl.pallas_call(
            kernel,
            out_shape=jax.ShapeDtypeStruct((M, V), out_dtype),
            grid_spec=pltpu.PrefetchScalarGridSpec(
                num_scalar_prefetch=0,
                grid=grid,
                in_specs=[
                    pl.BlockSpec((tm_eff, H), lambda i, j: (i, 0)),    # rows
                    pl.BlockSpec((H, H), lambda i, j: (0, 0), **ck),   # dense W
                    pl.BlockSpec((1, H), lambda i, j: (0, 0), **ck),   # bias
                    pl.BlockSpec((1, H), lambda i, j: (0, 0), **ck),   # gamma
                    pl.BlockSpec((1, H), lambda i, j: (0, 0), **ck),   # beta
                    pl.BlockSpec((tn_eff, H), lambda i, j: (j, 0)),    # vocab W
                ],
                out_specs=pl.BlockSpec((tm_eff, tn_eff), lambda i, j: (i, j)),
                scratch_shapes=[pltpu.VMEM((tm_eff, H), y_dtype)],
            ),
            compiler_params=compiler_params,
            cost_estimate=cost,
        )

    args = (feat2d, dense_w, bd, gamma, beta, weight)
    try:
        # Single-buffer the constant blocks: the (H, H) dense weight is by far
        # the biggest VMEM consumer and its index_map never changes, so one
        # resident copy suffices.
        out = jax.block_until_ready(build(pl.Buffered(1))(*args))
    except Exception:
        # jax build without pipeline_mode support on TPU: default buffering.
        out = jax.block_until_ready(build(None)(*args))

    return out.reshape(B, S, V)


def _reference(features, dense_w, dense_b, ln_gamma, ln_beta, weight, eps=1e-12):
    x = jnp.einsum("bsh,oh->bso", features, dense_w) + dense_b
    x = 0.5 * x * (1.0 + jax.lax.erf(x / jnp.sqrt(2.0)))
    mean = jnp.mean(x, axis=-1, keepdims=True)
    var = jnp.mean((x - mean) ** 2, axis=-1, keepdims=True)
    x = (x - mean) / jnp.sqrt(var + eps) * ln_gamma + ln_beta
    return jnp.einsum("bsh,vh->bsv", x, weight)


if __name__ == "__main__":
    # Small shapes that still exercise the tiling: V=600 is not a multiple of
    # the vocab tile, so the ragged-last-tile (masked writeback) path and a
    # (1 x 3) grid are both covered without any padding.
    B, S, H, V = 2, 8, 128, 600
    key = jax.random.PRNGKey(0)
    k_feat, k_wd, k_bd, k_g, k_be, k_w = jax.random.split(key, 6)

    features = jax.random.normal(k_feat, (B, S, H), dtype=jnp.float32)
    dense_w = jax.random.normal(k_wd, (H, H), dtype=jnp.float32) * 0.02
    dense_b = jax.random.normal(k_bd, (H,), dtype=jnp.float32) * 0.02
    ln_gamma = 1.0 + 0.1 * jax.random.normal(k_g, (H,), dtype=jnp.float32)
    ln_beta = 0.1 * jax.random.normal(k_be, (H,), dtype=jnp.float32)
    weight = jax.random.normal(k_w, (V, H), dtype=jnp.float32) * 0.02

    # f32 path: correctness check against the pure-JAX reference.
    out = entlm_head(features, dense_w, dense_b, ln_gamma, ln_beta, weight,
                     tm=16, tn=256)
    out = jax.block_until_ready(out)

    ref = _reference(features, dense_w, dense_b, ln_gamma, ln_beta, weight)
    assert out.shape == (B, S, V)
    assert jnp.allclose(out, ref, atol=2e-2, rtol=2e-2), "mismatch vs f32 reference"

    # bf16 weights/activations (f32 accumulation + f32 LN stats inside) smoke test.
    out_bf16 = entlm_head(features.astype(jnp.bfloat16),
                          dense_w.astype(jnp.bfloat16), dense_b,
                          ln_gamma, ln_beta,
                          weight.astype(jnp.bfloat16), tm=16, tn=256)
    out_bf16 = jax.block_until_ready(out_bf16)
    assert out_bf16.shape == (B, S, V)
    assert bool(jnp.isfinite(out_bf16.astype(jnp.float32)).all())

    print("KERNEL_OK")
</pallas_src>

<mosaic_0001>
module attributes {stable_mosaic.version = 11 : i64} {
  func.func @_entlm_head_kernel(%arg0: i32, %arg1: i32, %arg2: memref<16x128xf32, #tpu.memory_space<vmem>>, %arg3: memref<128x128xf32, #tpu.memory_space<vmem>>, %arg4: memref<1x128xf32, #tpu.memory_space<vmem>>, %arg5: memref<1x128xf32, #tpu.memory_space<vmem>>, %arg6: memref<1x128xf32, #tpu.memory_space<vmem>>, %arg7: memref<256x128xf32, #tpu.memory_space<vmem>>, %arg8: memref<16x256xf32, #tpu.memory_space<vmem>>, %arg9: memref<16x128xf32, #tpu.memory_space<vmem>>) attributes {dimension_semantics = [#tpu.dimension_semantics<parallel>, #tpu.dimension_semantics<arbitrary>], iteration_bounds = array<i64: 1, 3>, scalar_prefetch = 0 : i64, scratch_operands = 1 : i64, tpu.core_type = #tpu.core_type<tc>, window_params = [{transform_indices = @transform_0, window_bounds = array<i64: 16, 128>}, {pipeline_mode = #tpu.pipeline_mode<synchronous>, transform_indices = @transform_1, window_bounds = array<i64: 128, 128>}, {pipeline_mode = #tpu.pipeline_mode<synchronous>, transform_indices = @transform_2, window_bounds = array<i64: 1, 128>}, {pipeline_mode = #tpu.pipeline_mode<synchronous>, transform_indices = @transform_3, window_bounds = array<i64: 1, 128>}, {pipeline_mode = #tpu.pipeline_mode<synchronous>, transform_indices = @transform_4, window_bounds = array<i64: 1, 128>}, {transform_indices = @transform_5, window_bounds = array<i64: 256, 128>}, {transform_indices = @transform_6, window_bounds = array<i64: 16, 256>}]} {
    %c0_i32 = arith.constant 0 : i32
    %0 = arith.cmpi eq, %arg1, %c0_i32 : i32
    %1 = arith.extui %0 : i1 to i32
    %c0_i32_0 = arith.constant 0 : i32
    %2 = arith.cmpi ne, %1, %c0_i32_0 : i32
    scf.if %2 {
      %c0_6 = arith.constant 0 : index
      %c0_7 = arith.constant 0 : index
      %7 = vector.load %arg2[%c0_6, %c0_7] : memref<16x128xf32, #tpu.memory_space<vmem>>, vector<16x128xf32>
      %c0_8 = arith.constant 0 : index
      %c0_9 = arith.constant 0 : index
      %8 = vector.load %arg3[%c0_8, %c0_9] : memref<128x128xf32, #tpu.memory_space<vmem>>, vector<128x128xf32>
      %cst_10 = arith.constant dense<0.000000e+00> : vector<16x128xf32>
      %9 = tpu.matmul %7, %8, %cst_10 {dimension_numbers = #tpu.dot_dimension_numbers<[1], [1], [0], [0], [0, 0, 1, 0], [], []>} : vector<16x128xf32>, vector<128x128xf32>, vector<16x128xf32> -> vector<16x128xf32>
      %c0_11 = arith.constant 0 : index
      %c0_12 = arith.constant 0 : index
      %10 = vector.load %arg4[%c0_11, %c0_12] : memref<1x128xf32, #tpu.memory_space<vmem>>, vector<1x128xf32>
      %11 = vector.broadcast %10 : vector<1x128xf32> to vector<16x128xf32>
      %12 = arith.addf %9, %11 : vector<16x128xf32>
      %cst_13 = arith.constant 5.000000e-01 : f32
      %13 = vector.broadcast %cst_13 : f32 to vector<16x128xf32>
      %14 = arith.mulf %13, %12 : vector<16x128xf32>
      %cst_14 = arith.constant 0.707106769 : f32
      %15 = vector.broadcast %cst_14 : f32 to vector<16x128xf32>
      %16 = arith.mulf %12, %15 : vector<16x128xf32>
      %17 = math.erf %16 : vector<16x128xf32>
      %cst_15 = arith.constant 1.000000e+00 : f32
      %18 = vector.broadcast %cst_15 : f32 to vector<16x128xf32>
      %19 = arith.addf %18, %17 : vector<16x128xf32>
      %20 = arith.mulf %14, %19 : vector<16x128xf32>
      %cst_16 = arith.constant dense<0.000000e+00> : vector<16xf32>
      %21 = vector.multi_reduction <add>, %20, %cst_16 [1] : vector<16x128xf32> to vector<16xf32>
      %22 = vector.shape_cast %21 : vector<16xf32> to vector<16x1xf32>
      %cst_17 = arith.constant 1.280000e+02 : f32
      %23 = vector.broadcast %cst_17 : f32 to vector<16x1xf32>
      %24 = arith.divf %22, %23 : vector<16x1xf32>
      %25 = vector.broadcast %24 : vector<16x1xf32> to vector<16x128xf32>
      %26 = arith.subf %20, %25 : vector<16x128xf32>
      %27 = arith.mulf %26, %26 : vector<16x128xf32>
      %cst_18 = arith.constant dense<0.000000e+00> : vector<16xf32>
      %28 = vector.multi_reduction <add>, %27, %cst_18 [1] : vector<16x128xf32> to vector<16xf32>
      %29 = vector.shape_cast %28 : vector<16xf32> to vector<16x1xf32>
      %cst_19 = arith.constant 1.280000e+02 : f32
      %30 = vector.broadcast %cst_19 : f32 to vector<16x1xf32>
      %31 = arith.divf %29, %30 : vector<16x1xf32>
      %cst_20 = arith.constant 9.99999996E-13 : f32
      %32 = vector.broadcast %cst_20 : f32 to vector<16x1xf32>
      %33 = arith.addf %31, %32 : vector<16x1xf32>
      %34 = math.rsqrt %33 : vector<16x1xf32>
      %35 = vector.broadcast %34 : vector<16x1xf32> to vector<16x128xf32>
      %36 = arith.mulf %26, %35 : vector<16x128xf32>
      %c0_21 = arith.constant 0 : index
      %c0_22 = arith.constant 0 : index
      %37 = vector.load %arg5[%c0_21, %c0_22] : memref<1x128xf32, #tpu.memory_space<vmem>>, vector<1x128xf32>
      %38 = vector.broadcast %37 : vector<1x128xf32> to vector<16x128xf32>
      %39 = arith.mulf %36, %38 : vector<16x128xf32>
      %c0_23 = arith.constant 0 : index
      %c0_24 = arith.constant 0 : index
      %40 = vector.load %arg6[%c0_23, %c0_24] : memref<1x128xf32, #tpu.memory_space<vmem>>, vector<1x128xf32>
      %41 = vector.broadcast %40 : vector<1x128xf32> to vector<16x128xf32>
      %42 = arith.addf %39, %41 : vector<16x128xf32>
      %c0_25 = arith.constant 0 : index
      %c0_26 = arith.constant 0 : index
      %43 = vector.load %arg9[%c0_25, %c0_26] : memref<16x128xf32, #tpu.memory_space<vmem>>, vector<16x128xf32>
      tpu.vector_store %arg9[%c0_25, %c0_26], %42 {strides = array<i32>} : memref<16x128xf32, #tpu.memory_space<vmem>>, vector<16x128xf32>,
    } else {
    }
    %c0 = arith.constant 0 : index
    %c0_1 = arith.constant 0 : index
    %3 = vector.load %arg9[%c0, %c0_1] : memref<16x128xf32, #tpu.memory_space<vmem>>, vector<16x128xf32>
    %c0_2 = arith.constant 0 : index
    %c0_3 = arith.constant 0 : index
    %4 = vector.load %arg7[%c0_2, %c0_3] : memref<256x128xf32, #tpu.memory_space<vmem>>, vector<256x128xf32>
    %cst = arith.constant dense<0.000000e+00> : vector<16x256xf32>
    %5 = tpu.matmul %3, %4, %cst {dimension_numbers = #tpu.dot_dimension_numbers<[1], [1], [0], [0], [0, 0, 1, 0], [], []>} : vector<16x128xf32>, vector<256x128xf32>, vector<16x256xf32> -> vector<16x256xf32>
    %c0_4 = arith.constant 0 : index
    %c0_5 = arith.constant 0 : index
    %6 = vector.load %arg8[%c0_4, %c0_5] : memref<16x256xf32, #tpu.memory_space<vmem>>, vector<16x256xf32>
    tpu.vector_store %arg8[%c0_4, %c0_5], %5 {strides = array<i32>} : memref<16x256xf32, #tpu.memory_space<vmem>>, vector<16x256xf32>,
    return
  }
  func.func @transform_0(%arg0: i32, %arg1: i32) -> (i32, i32) {
    %c0_i32 = arith.constant 0 : i32
    %c0_i32_0 = arith.constant 0 : i32
    return %arg0, %c0_i32 : i32, i32
  }
  func.func @transform_1(%arg0: i32, %arg1: i32) -> (i32, i32) {
    %c0_i32 = arith.constant 0 : i32
    %c0_i32_0 = arith.constant 0 : i32
    %c0_i32_1 = arith.constant 0 : i32
    return %c0_i32, %c0_i32_0 : i32, i32
  }
  func.func @transform_2(%arg0: i32, %arg1: i32) -> (i32, i32) {
    %c0_i32 = arith.constant 0 : i32
    %c0_i32_0 = arith.constant 0 : i32
    %c0_i32_1 = arith.constant 0 : i32
    return %c0_i32, %c0_i32_0 : i32, i32
  }
  func.func @transform_3(%arg0: i32, %arg1: i32) -> (i32, i32) {
    %c0_i32 = arith.constant 0 : i32
    %c0_i32_0 = arith.constant 0 : i32
    %c0_i32_1 = arith.constant 0 : i32
    return %c0_i32, %c0_i32_0 : i32, i32
  }
  func.func @transform_4(%arg0: i32, %arg1: i32) -> (i32, i32) {
    %c0_i32 = arith.constant 0 : i32
    %c0_i32_0 = arith.constant 0 : i32
    %c0_i32_1 = arith.constant 0 : i32
    return %c0_i32, %c0_i32_0 : i32, i32
  }
  func.func @transform_5(%arg0: i32, %arg1: i32) -> (i32, i32) {
    %c0_i32 = arith.constant 0 : i32
    %c0_i32_0 = arith.constant 0 : i32
    return %arg1, %c0_i32 : i32, i32
  }
  func.func @transform_6(%arg0: i32, %arg1: i32) -> (i32, i32) {
    %c0_i32 = arith.constant 0 : i32
    return %arg0, %arg1 : i32, i32
  }
}

module attributes {stable_mosaic.version = 11 : i64} {
  func.func @_entlm_head_kernel(%arg0: i32, %arg1: i32, %arg2: memref<16x128xf32, #tpu.memory_space<vmem>>, %arg3: memref<128x128xf32, #tpu.memory_space<vmem>>, %arg4: memref<1x128xf32, #tpu.memory_space<vmem>>, %arg5: memref<1x128xf32, #tpu.memory_space<vmem>>, %arg6: memref<1x128xf32, #tpu.memory_space<vmem>>, %arg7: memref<256x128xf32, #tpu.memory_space<vmem>>, %arg8: memref<16x256xf32, #tpu.memory_space<vmem>>, %arg9: memref<16x128xf32, #tpu.memory_space<vmem>>) attributes {dimension_semantics = [#tpu.dimension_semantics<parallel>, #tpu.dimension_semantics<arbitrary>], iteration_bounds = array<i64: 1, 3>, scalar_prefetch = 0 : i64, scratch_operands = 1 : i64, tpu.core_type = #tpu.core_type<tc>, window_params = [{transform_indices = @transform_0, window_bounds = array<i64: 16, 128>}, {pipeline_mode = #tpu.pipeline_mode<synchronous>, transform_indices = @transform_1, window_bounds = array<i64: 128, 128>}, {pipeline_mode = #tpu.pipeline_mode<synchronous>, transform_indices = @transform_2, window_bounds = array<i64: 1, 128>}, {pipeline_mode = #tpu.pipeline_mode<synchronous>, transform_indices = @transform_3, window_bounds = array<i64: 1, 128>}, {pipeline_mode = #tpu.pipeline_mode<synchronous>, transform_indices = @transform_4, window_bounds = array<i64: 1, 128>}, {transform_indices = @transform_5, window_bounds = array<i64: 256, 128>}, {transform_indices = @transform_6, window_bounds = array<i64: 16, 256>}]} {
    %c0_i32 = arith.constant 0 : i32
    %0 = arith.cmpi eq, %arg1, %c0_i32 : i32
    %1 = arith.extui %0 : i1 to i32
    %c0_i32_0 = arith.constant 0 : i32
    %2 = arith.cmpi ne, %1, %c0_i32_0 : i32
    scf.if %2 {
      %c0_6 = arith.constant 0 : index
      %c0_7 = arith.constant 0 : index
      %7 = vector.load %arg2[%c0_6, %c0_7] : memref<16x128xf32, #tpu.memory_space<vmem>>, vector<16x128xf32>
      %c0_8 = arith.constant 0 : index
      %c0_9 = arith.constant 0 : index
      %8 = vector.load %arg3[%c0_8, %c0_9] : memref<128x128xf32, #tpu.memory_space<vmem>>, vector<128x128xf32>
      %cst_10 = arith.constant dense<0.000000e+00> : vector<16x128xf32>
      %9 = tpu.matmul %7, %8, %cst_10 {dimension_numbers = #tpu.dot_dimension_numbers<[1], [1], [0], [0], [0, 0, 1, 0], [], []>} : vector<16x128xf32>, vector<128x128xf32>, vector<16x128xf32> -> vector<16x128xf32>
      %c0_11 = arith.constant 0 : index
      %c0_12 = arith.constant 0 : index
      %10 = vector.load %arg4[%c0_11, %c0_12] : memref<1x128xf32, #tpu.memory_space<vmem>>, vector<1x128xf32>
      %11 = vector.broadcast %10 : vector<1x128xf32> to vector<16x128xf32>
      %12 = arith.addf %9, %11 : vector<16x128xf32>
      %cst_13 = arith.constant 5.000000e-01 : f32
      %13 = vector.broadcast %cst_13 : f32 to vector<16x128xf32>
      %14 = arith.mulf %13, %12 : vector<16x128xf32>
      %cst_14 = arith.constant 0.707106769 : f32
      %15 = vector.broadcast %cst_14 : f32 to vector<16x128xf32>
      %16 = arith.mulf %12, %15 : vector<16x128xf32>
      %17 = math.erf %16 : vector<16x128xf32>
      %cst_15 = arith.constant 1.000000e+00 : f32
      %18 = vector.broadcast %cst_15 : f32 to vector<16x128xf32>
      %19 = arith.addf %18, %17 : vector<16x128xf32>
      %20 = arith.mulf %14, %19 : vector<16x128xf32>
      %cst_16 = arith.constant dense<0.000000e+00> : vector<16xf32>
      %21 = vector.multi_reduction <add>, %20, %cst_16 [1] : vector<16x128xf32> to vector<16xf32>
      %22 = vector.shape_cast %21 : vector<16xf32> to vector<16x1xf32>
      %cst_17 = arith.constant 1.280000e+02 : f32
      %23 = vector.broadcast %cst_17 : f32 to vector<16x1xf32>
      %24 = arith.divf %22, %23 : vector<16x1xf32>
      %25 = vector.broadcast %24 : vector<16x1xf32> to vector<16x128xf32>
      %26 = arith.subf %20, %25 : vector<16x128xf32>
      %27 = arith.mulf %26, %26 : vector<16x128xf32>
      %cst_18 = arith.constant dense<0.000000e+00> : vector<16xf32>
      %28 = vector.multi_reduction <add>, %27, %cst_18 [1] : vector<16x128xf32> to vector<16xf32>
      %29 = vector.shape_cast %28 : vector<16xf32> to vector<16x1xf32>
      %cst_19 = arith.constant 1.280000e+02 : f32
      %30 = vector.broadcast %cst_19 : f32 to vector<16x1xf32>
      %31 = arith.divf %29, %30 : vector<16x1xf32>
      %cst_20 = arith.constant 9.99999996E-13 : f32
      %32 = vector.broadcast %cst_20 : f32 to vector<16x1xf32>
      %33 = arith.addf %31, %32 : vector<16x1xf32>
      %34 = math.rsqrt %33 : vector<16x1xf32>
      %35 = vector.broadcast %34 : vector<16x1xf32> to vector<16x128xf32>
      %36 = arith.mulf %26, %35 : vector<16x128xf32>
      %c0_21 = arith.constant 0 : index
      %c0_22 = arith.constant 0 : index
      %37 = vector.load %arg5[%c0_21, %c0_22] : memref<1x128xf32, #tpu.memory_space<vmem>>, vector<1x128xf32>
      %38 = vector.broadcast %37 : vector<1x128xf32> to vector<16x128xf32>
      %39 = arith.mulf %36, %38 : vector<16x128xf32>
      %c0_23 = arith.constant 0 : index
      %c0_24 = arith.constant 0 : index
      %40 = vector.load %arg6[%c0_23, %c0_24] : memref<1x128xf32, #tpu.memory_space<vmem>>, vector<1x128xf32>
      %41 = vector.broadcast %40 : vector<1x128xf32> to vector<16x128xf32>
      %42 = arith.addf %39, %41 : vector<16x128xf32>
      %c0_25 = arith.constant 0 : index
      %c0_26 = arith.constant 0 : index
      %43 = vector.load %arg9[%c0_25, %c0_26] : memref<16x128xf32, #tpu.memory_space<vmem>>, vector<16x128xf32>
      tpu.vector_store %arg9[%c0_25, %c0_26], %42 {strides = array<i32>} : memref<16x128xf32, #tpu.memory_space<vmem>>, vector<16x128xf32>,
    } else {
    }
    %c0 = arith.constant 0 : index
    %c0_1 = arith.constant 0 : index
    %3 = vector.load %arg9[%c0, %c0_1] : memref<16x128xf32, #tpu.memory_space<vmem>>, vector<16x128xf32>
    %c0_2 = arith.constant 0 : index
    %c0_3 = arith.constant 0 : index
    %4 = vector.load %arg7[%c0_2, %c0_3] : memref<256x128xf32, #tpu.memory_space<vmem>>, vector<256x128xf32>
    %cst = arith.constant dense<0.000000e+00> : vector<16x256xf32>
    %5 = tpu.matmul %3, %4, %cst {dimension_numbers = #tpu.dot_dimension_numbers<[1], [1], [0], [0], [0, 0, 1, 0], [], []>} : vector<16x128xf32>, vector<256x128xf32>, vector<16x256xf32> -> vector<16x256xf32>
    %c0_4 = arith.constant 0 : index
    %c0_5 = arith.constant 0 : index
    %6 = vector.load %arg8[%c0_4, %c0_5] : memref<16x256xf32, #tpu.memory_space<vmem>>, vector<16x256xf32>
    tpu.vector_store %arg8[%c0_4, %c0_5], %5 {strides = array<i32>} : memref<16x256xf32, #tpu.memory_space<vmem>>, vector<16x256xf32>,
    return
  }
  func.func @transform_0(%arg0: i32, %arg1: i32) -> (i32, i32) {
    %c0_i32 = arith.constant 0 : i32
    %c0_i32_0 = arith.constant 0 : i32
    return %arg0, %c0_i32 : i32, i32
  }
  func.func @transform_1(%arg0: i32, %arg1: i32) -> (i32, i32) {
    %c0_i32 = arith.constant 0 : i32
    %c0_i32_0 = arith.constant 0 : i32
    %c0_i32_1 = arith.constant 0 : i32
    return %c0_i32, %c0_i32_0 : i32, i32
  }
  func.func @transform_2(%arg0: i32, %arg1: i32) -> (i32, i32) {
    %c0_i32 = arith.constant 0 : i32
    %c0_i32_0 = arith.constant 0 : i32
    %c0_i32_1 = arith.constant 0 : i32
    return %c0_i32, %c0_i32_0 : i32, i32
  }
  func.func @transform_3(%arg0: i32, %arg1: i32) -> (i32, i32) {
    %c0_i32 = arith.constant 0 : i32
    %c0_i32_0 = arith.constant 0 : i32
    %c0_i32_1 = arith.constant 0 : i32
    return %c0_i32, %c0_i32_0 : i32, i32
  }
  func.func @transform_4(%arg0: i32, %arg1: i32) -> (i32, i32) {
    %c0_i32 = arith.constant 0 : i32
    %c0_i32_0 = arith.constant 0 : i32
    %c0_i32_1 = arith.constant 0 : i32
    return %c0_i32, %c0_i32_0 : i32, i32
  }
  func.func @transform_5(%arg0: i32, %arg1: i32) -> (i32, i32) {
    %c0_i32 = arith.constant 0 : i32
    %c0_i32_0 = arith.constant 0 : i32
    return %arg1, %c0_i32 : i32, i32
  }
  func.func @transform_6(%arg0: i32, %arg1: i32) -> (i32, i32) {
    %c0_i32 = arith.constant 0 : i32
    return %arg0, %arg1 : i32, i32
  }
}

</mosaic_0001>

<llo_original>
// kernel: tpu_custom_call.1
$region0: #{tpu_custom_call.1}
  #allocation0 [shape = 'u32[]', space=smem, size = 0x4, offset = 0x4, fixed_abs, tag = 'smem constant byte address 0x4 - core index']
  #allocation1 [shape = 'u32[144,128]{1,0:T(1,128)}', space=vmem, size = 0x12000, scoped, tag = 'internal scratch']
  #allocation2 [shape = 'f32[16,128]{1,0:T(8,128)}', space=vmem, size = 0x2000, scoped, tag = 'scratch operand']
  %s0 = inlined_call_operand.hbm [shape: f32[16,128], index: 0, kind: input, shape index: {}]
  %s1 = inlined_call_operand.hbm [shape: f32[128,128], index: 1, kind: input, shape index: {}]
  %s2 = inlined_call_operand.vmem [shape: f32[1,128], index: 2, kind: input, shape index: {}]
  %s3 = inlined_call_operand.vmem [shape: f32[1,128], index: 3, kind: input, shape index: {}]
  %s4 = inlined_call_operand.vmem [shape: f32[1,128], index: 4, kind: input, shape index: {}]
  %s5 = inlined_call_operand.hbm [shape: f32[600,128], index: 5, kind: input, shape index: {}]
  %s6 = inlined_call_operand.hbm [shape: f32[16,600], index: 6, kind: output, shape index: {}]
  %s7 = sld [smem:[#allocation0]]
  $region73: #{tpu_custom_call.1} parent=0
    _
  %s9 = ssub.s32 1, %s7
  %s10 = scalar_select 0, %s9, %s7
  $region1: #{tpu_custom_call.1} parent=0
    #allocation3 [shape = 'u8[8192]{0}', space=vmem, size = 0x2000, scoped, tag = 'input window, operand 0, single buffered']
    #allocation4 [shape = 's32[2]{0}', space=sflag, size = 0x8, scoped, tag = 'scoped memory for tpu_custom_call.1']
    #allocation5 [shape = 's32[2]{0}', space=sflag, size = 0x8, scoped, tag = 'scoped memory for tpu_custom_call.1']
    #allocation6 [shape = 'u8[65536]{0}', space=vmem, size = 0x10000, scoped, tag = 'input window, operand 1, single buffered']
    #allocation7 [shape = 's32[1]{0}', space=sflag, size = 0x4, scoped, tag = 'scoped memory for tpu_custom_call.1']
    #allocation8 [shape = 'u8[262144]{0}', space=vmem, size = 0x40000, scoped, tag = 'input window, operand 5']
    #allocation9 [shape = 'u8[32768]{0}', space=vmem, size = 0x8000, scoped, tag = 'output window, operand 0']
    %11 = vsyncpa [#allocation4], 0
    %12 = vsyncpa [#allocation7], 0
    %13 = vsyncpa [#allocation5], 0
    %s14 = scalar_lea.sflag [#allocation5], 1
    %15 = vsyncpa %s14, 0
    loop: start=0, step=1, limit=5
    $region2: #{tpu_custom_call.1} parent=1 // loop_pre_header
      _
    $region3: #{tpu_custom_call.1} parent=1 // loop_header
      %s17 = sphi 0, %s21
      %p18 = scmp.ge.s32.totalorder %s17, 5
      %s24 = sphi 0, %s36
      %s25 = sphi 0, %s32
      %s26 = sphi 0, %s24
      %s27 = sphi 0, %s25
      %s28 = sphi 0, %s26
      %s29 = sphi 0, %s27
      %s39 = sphi 0, %s41
      %s42 = sphi 0, %s39
      %s43 = sphi 0, %s42
      %s59 = sphi 0, %s43
      %s63 = sphi 0, %s63
      %s65 = sphi 0, %s63
      %s66 = sphi 0, %s65
      %s80 = sphi 0, %s66
      %s84 = sphi 0, %s84
      %s86 = sphi 0, %s84
      %s87 = sphi 0, %s86
      %s101 = sphi 0, %s87
      %s105 = sphi 0, %s105
      %s107 = sphi 0, %s105
      %s108 = sphi 0, %s107
      %s122 = sphi 0, %s108
      %s126 = sphi 0, %s126
      %s128 = sphi 0, %s126
      %s129 = sphi 0, %s128
      %s143 = sphi 0, %s129
      %s149 = sphi 0, %s151
      %s152 = sphi 0, %s149
      %s153 = sphi 0, %s152
      %s169 = sphi 0, %s153
      %s177 = sphi 0, %s179
      %s180 = sphi 0, %s177
      %s181 = sphi 0, %s180
      %s197 = sphi 0, %s181
    $region4: #{tpu_custom_call.1} parent=1 // loop_header_branch
      %20 = sbr.rel (%p18) target = $region8
    $region5: #{tpu_custom_call.1} parent=1 // loop_body
      %s22 = ssub.s32 %s17, 1
      %s23 = ssub.s32 %s17, 2
      %s30 = sadd.s32 1, %s25
      %p31 = scmp.ge.s32.totalorder %s30, 3
      %s32 = scalar_select %p31, 0, %s30
      %s33 = sadd.s32 1, %s24
      %s34 = scalar_select %p31, %s33, %s24
      %p35 = scmp.ge.s32.totalorder %s34, 1
      %s36 = scalar_select %p35, 0, %s34
      %s37 = ssub.s32 %s24, %s36
      %p38 = scmp.eq.s32.totalorder %s37, 0
      %s40 = sadd.s32 %s39, 1
      %s41 = scalar_select %p38, %s39, %s40
      %p44 = pneg %p38
      %p45 = scmp.eq.s32.totalorder %s17, 2
      %p46 = por %p44, %p45
      %p47 = scmp.ne.s32.totalorder %s39, %s42
      %p48 = scmp.eq.s32.totalorder %s17, 0
      %p49 = por %p47, %p48
      %p50 = scmp.ne.s32.totalorder %s39, %s42
      %p51 = scmp.eq.s32.totalorder %s22, 2
      %p52 = por %p50, %p51
      %p53 = scmp.ne.s32.totalorder %s42, %s43
      %p54 = scmp.eq.s32.totalorder %s22, 0
      %p55 = por %p53, %p54
      %p56 = scmp.ne.s32.totalorder %s42, %s43
      %p57 = scmp.eq.s32.totalorder %s23, 2
      %p58 = por %p56, %p57
      %p60 = scmp.ne.s32.totalorder %s43, %s59
      %p61 = scmp.eq.s32.totalorder %s23, 0
      %p62 = por %p60, %p61
      %s64 = sadd.s32 %s63, 1
      %p67 = scmp.eq.s32.totalorder %s17, 2
      %p68 = scmp.ne.s32.totalorder %s63, %s65
      %p69 = scmp.eq.s32.totalorder %s17, 0
      %p70 = por %p68, %p69
      %p71 = scmp.ne.s32.totalorder %s63, %s65
      %p72 = scmp.eq.s32.totalorder %s22, 2
      %p73 = por %p71, %p72
      %p74 = scmp.ne.s32.totalorder %s65, %s66
      %p75 = scmp.eq.s32.totalorder %s22, 0
      %p76 = por %p74, %p75
      %p77 = scmp.ne.s32.totalorder %s65, %s66
      %p78 = scmp.eq.s32.totalorder %s23, 2
      %p79 = por %p77, %p78
      %p81 = scmp.ne.s32.totalorder %s66, %s80
      %p82 = scmp.eq.s32.totalorder %s23, 0
      %p83 = por %p81, %p82
      %s85 = sadd.s32 %s84, 1
      %p88 = scmp.eq.s32.totalorder %s17, 2
      %p89 = scmp.ne.s32.totalorder %s84, %s86
      %p90 = scmp.eq.s32.totalorder %s17, 0
      %p91 = por %p89, %p90
      %p92 = scmp.ne.s32.totalorder %s84, %s86
      %p93 = scmp.eq.s32.totalorder %s22, 2
      %p94 = por %p92, %p93
      %p95 = scmp.ne.s32.totalorder %s86, %s87
      %p96 = scmp.eq.s32.totalorder %s22, 0
      %p97 = por %p95, %p96
      %p98 = scmp.ne.s32.totalorder %s86, %s87
      %p99 = scmp.eq.s32.totalorder %s23, 2
      %p100 = por %p98, %p99
      %p102 = scmp.ne.s32.totalorder %s87, %s101
      %p103 = scmp.eq.s32.totalorder %s23, 0
      %p104 = por %p102, %p103
      %s106 = sadd.s32 %s105, 1
      %p109 = scmp.eq.s32.totalorder %s17, 2
      %p110 = scmp.ne.s32.totalorder %s105, %s107
      %p111 = scmp.eq.s32.totalorder %s17, 0
      %p112 = por %p110, %p111
      %p113 = scmp.ne.s32.totalorder %s105, %s107
      %p114 = scmp.eq.s32.totalorder %s22, 2
      %p115 = por %p113, %p114
      %p116 = scmp.ne.s32.totalorder %s107, %s108
      %p117 = scmp.eq.s32.totalorder %s22, 0
      %p118 = por %p116, %p117
      %p119 = scmp.ne.s32.totalorder %s107, %s108
      %p120 = scmp.eq.s32.totalorder %s23, 2
      %p121 = por %p119, %p120
      %p123 = scmp.ne.s32.totalorder %s108, %s122
      %p124 = scmp.eq.s32.totalorder %s23, 0
      %p125 = por %p123, %p124
      %s127 = sadd.s32 %s126, 1
      %p130 = scmp.eq.s32.totalorder %s17, 2
      %p131 = scmp.ne.s32.totalorder %s126, %s128
      %p132 = scmp.eq.s32.totalorder %s17, 0
      %p133 = por %p131, %p132
      %p134 = scmp.ne.s32.totalorder %s126, %s128
      %p135 = scmp.eq.s32.totalorder %s22, 2
      %p136 = por %p134, %p135
      %p137 = scmp.ne.s32.totalorder %s128, %s129
      %p138 = scmp.eq.s32.totalorder %s22, 0
      %p139 = por %p137, %p138
      %p140 = scmp.ne.s32.totalorder %s128, %s129
      %p141 = scmp.eq.s32.totalorder %s23, 2
      %p142 = por %p140, %p141
      %p144 = scmp.ne.s32.totalorder %s129, %s143
      %p145 = scmp.eq.s32.totalorder %s23, 0
      %p146 = por %p144, %p145
      %s147 = ssub.s32 %s25, %s32
      %p148 = scmp.eq.s32.totalorder %s147, 0
      %s150 = sadd.s32 %s149, 1
      %s151 = scalar_select %p148, %s149, %s150
      %p154 = pneg %p148
      %p155 = scmp.eq.s32.totalorder %s17, 2
      %p156 = por %p154, %p155
      %p157 = scmp.ne.s32.totalorder %s149, %s152
      %p158 = scmp.eq.s32.totalorder %s17, 0
      %p159 = por %p157, %p158
      %p160 = scmp.ne.s32.totalorder %s149, %s152
      %p161 = scmp.eq.s32.totalorder %s22, 2
      %p162 = por %p160, %p161
      %p163 = scmp.ne.s32.totalorder %s152, %s153
      %p164 = scmp.eq.s32.totalorder %s22, 0
      %p165 = por %p163, %p164
      %p166 = scmp.ne.s32.totalorder %s152, %s153
      %p167 = scmp.eq.s32.totalorder %s23, 2
      %p168 = por %p166, %p167
      %p170 = scmp.ne.s32.totalorder %s153, %s169
      %p171 = scmp.eq.s32.totalorder %s23, 0
      %p172 = por %p170, %p171
      %s173 = ssub.s32 %s24, %s36
      %s174 = ssub.s32 %s25, %s32
      %s175 = sor.u32 %s173, %s174
      %p176 = scmp.eq.s32.totalorder %s175, 0
      %s178 = sadd.s32 %s177, 1
      %s179 = scalar_select %p176, %s177, %s178
      %p182 = pneg %p176
      %p183 = scmp.eq.s32.totalorder %s17, 2
      %p184 = por %p182, %p183
      %p185 = scmp.ne.s32.totalorder %s177, %s180
      %p186 = scmp.eq.s32.totalorder %s17, 0
      %p187 = por %p185, %p186
      %p188 = scmp.ne.s32.totalorder %s177, %s180
      %p189 = scmp.eq.s32.totalorder %s22, 2
      %p190 = por %p188, %p189
      %p191 = scmp.ne.s32.totalorder %s180, %s181
      %p192 = scmp.eq.s32.totalorder %s22, 0
      %p193 = por %p191, %p192
      %p194 = scmp.ne.s32.totalorder %s180, %s181
      %p195 = scmp.eq.s32.totalorder %s23, 2
      %p196 = por %p194, %p195
      %p198 = scmp.ne.s32.totalorder %s181, %s197
      %p199 = scmp.eq.s32.totalorder %s23, 0
      %p200 = por %p198, %p199
      %p201 = scmp.le.s32.totalorder 1, %s17
      %p202 = scmp.lt.s32.totalorder %s17, 4
      %p203 = pnand %p201, %p202
      %p204 = pneg %p203
      // Predicated region
      $region9: #{tpu_custom_call.1} parent=5 // pred_check
        _
      $region10: #{tpu_custom_call.1} parent=5 // pred_check_branch
        %206 = sbr.rel (%p203) target = $region12
      $region11: #{tpu_custom_call.1} parent=5 // pred_region
        %s207 = ssub.s32 %s17, 1
        // Predicated region
        $region13: #{tpu_custom_call.1} parent=11 // pred_check
          %p208 = pneg %p55
        $region14: #{tpu_custom_call.1} parent=11 // pred_check_branch
          %210 = sbr.rel (%p208) target = $region16
        $region15: #{tpu_custom_call.1} parent=11 // pred_region
          %s211 = smul.u32 2, %s26
          %s213 = ssub.s32 256, 256
          %214 = vsyncadd [#allocation4], %s213
          %s215 = smul.addr %s211, 128
          %s216 = scalar_lea.hbm %s0, %s215
          %s217 = sshll.u32 [#allocation3], 4
          %s218 = int_to_ptr.vmem [resolvable:$true] %s217
          %223 = dma.hbm_to_vmem [thread:$0]  %s216, 256, %s218, [#allocation4], 128, 128, 8
        $region16: #{tpu_custom_call.1} parent=11 // pred_fallthru
          _
        // Predicated region
        $region17: #{tpu_custom_call.1} parent=11 // pred_check
          %p224 = pneg %p76
        $region18: #{tpu_custom_call.1} parent=11 // pred_check_branch
          %226 = sbr.rel (%p224) target = $region20
        $region19: #{tpu_custom_call.1} parent=11 // pred_region
          %s228 = ssub.s32 2048, 2048
          %229 = vsyncadd [#allocation7], %s228
          %s230 = sshll.u32 [#allocation6], 4
          %s231 = int_to_ptr.vmem [resolvable:$true] %s230
          %236 = dma.hbm_to_vmem [thread:$0]  %s1, 2048, %s231, [#allocation7], 128, 128, 8
        $region20: #{tpu_custom_call.1} parent=11 // pred_fallthru
          _
        // Predicated region
        $region21: #{tpu_custom_call.1} parent=11 // pred_check
          %p237 = pneg %p97
        $region22: #{tpu_custom_call.1} parent=11 // pred_check_branch
          %239 = sbr.rel (%p237) target = $region24
        $region23: #{tpu_custom_call.1} parent=11 // pred_region
          _
        $region24: #{tpu_custom_call.1} parent=11 // pred_fallthru
          _
        // Predicated region
        $region25: #{tpu_custom_call.1} parent=11 // pred_check
          %p240 = pneg %p118
        $region26: #{tpu_custom_call.1} parent=11 // pred_check_branch
          %242 = sbr.rel (%p240) target = $region28
        $region27: #{tpu_custom_call.1} parent=11 // pred_region
          _
        $region28: #{tpu_custom_call.1} parent=11 // pred_fallthru
          _
        // Predicated region
        $region29: #{tpu_custom_call.1} parent=11 // pred_check
          %p243 = pneg %p139
        $region30: #{tpu_custom_call.1} parent=11 // pred_check_branch
          %245 = sbr.rel (%p243) target = $region32
        $region31: #{tpu_custom_call.1} parent=11 // pred_region
          _
        $region32: #{tpu_custom_call.1} parent=11 // pred_fallthru
          _
      $region12: #{tpu_custom_call.1} parent=5 // pred_fallthru
        _
      %p246 = scmp.lt.s32.totalorder %s17, 3
      // Predicated region
      $region33: #{tpu_custom_call.1} parent=5 // pred_check
        %p247 = pneg %p246
      $region34: #{tpu_custom_call.1} parent=5 // pred_check_branch
        %249 = sbr.rel (%p247) target = $region36
      $region35: #{tpu_custom_call.1} parent=5 // pred_region
        // Predicated region
        $region37: #{tpu_custom_call.1} parent=35 // pred_check
          %p250 = pneg %p159
        $region38: #{tpu_custom_call.1} parent=35 // pred_check_branch
          %252 = sbr.rel (%p250) target = $region40
        $region39: #{tpu_custom_call.1} parent=35 // pred_region
          %s253 = sand.u32 %s17, 1
          %s254 = scalar_lea.sflag [#allocation4], %s253
          %s255 = sand.u32 %s149, 1
          %s256 = smul.addr %s255, 256
          %s257 = scalar_lea.vmem [#allocation8], %s256
          %s258 = smul.u32 32, %s25
          %s259 = ssub.s32 75, %s258
          %p260 = scmp.lt.s32.totalorder %s259, 32
          %s261 = scalar_select %p260, %s259, 32
          %s262 = smul.u32 128, %s261
          %s264 = ssub.s32 4096, %s262
          %265 = vsyncadd %s254, %s264
          %p266 = scmp.ne.s32.totalorder 0, %s262
          %s267 = smul.addr %s258, 128
          %s268 = scalar_lea.hbm %s5, %s267
          %s269 = smul.u32 8, %s261
          %s270 = sshll.u32 %s257, 4
          %s271 = int_to_ptr.vmem [resolvable:$true] %s270
          %s272 = sshll.u32 %s269, 4
          %276 = dma.hbm_to_vmem [thread:$0]  (%p266), %s268, %s272, %s271, %s254, 128, 128, 8
        $region40: #{tpu_custom_call.1} parent=35 // pred_fallthru
          _
      $region36: #{tpu_custom_call.1} parent=5 // pred_fallthru
        _
      %p277 = scmp.le.s32.totalorder 1, %s17
      %p278 = scmp.lt.s32.totalorder %s17, 4
      %p279 = pnand %p277, %p278
      %p280 = pneg %p279
      // Predicated region
      $region41: #{tpu_custom_call.1} parent=5 // pred_check
        _
      $region42: #{tpu_custom_call.1} parent=5 // pred_check_branch
        %282 = sbr.rel (%p279) target = $region44
      $region43: #{tpu_custom_call.1} parent=5 // pred_region
        %s283 = ssub.s32 %s17, 1
        // Predicated region
        $region45: #{tpu_custom_call.1} parent=43 // pred_check
          %p284 = pneg %p55
        $region46: #{tpu_custom_call.1} parent=43 // pred_check_branch
          %286 = sbr.rel (%p284) target = $region48
        $region47: #{tpu_custom_call.1} parent=43 // pred_region
          %287 = dma.done [#allocation4], 256
        $region48: #{tpu_custom_call.1} parent=43 // pred_fallthru
          _
        // Predicated region
        $region49: #{tpu_custom_call.1} parent=43 // pred_check
          %p288 = pneg %p76
        $region50: #{tpu_custom_call.1} parent=43 // pred_check_branch
          %290 = sbr.rel (%p288) target = $region52
        $region51: #{tpu_custom_call.1} parent=43 // pred_region
          %291 = dma.done [#allocation7], 2048
        $region52: #{tpu_custom_call.1} parent=43 // pred_fallthru
          _
        %s292 = sand.u32 %s22, 1
        %s293 = scalar_lea.sflag [#allocation4], %s292
        %s294 = sand.u32 %s152, 1
        %s295 = smul.addr %s294, 256
        %s296 = scalar_lea.vmem [#allocation8], %s295
        // Predicated region
        $region53: #{tpu_custom_call.1} parent=43 // pred_check
          %p297 = pneg %p165
        $region54: #{tpu_custom_call.1} parent=43 // pred_check_branch
          %299 = sbr.rel (%p297) target = $region56
        $region55: #{tpu_custom_call.1} parent=43 // pred_region
          %300 = dma.done %s293, 4096
        $region56: #{tpu_custom_call.1} parent=43 // pred_fallthru
          _
        %p301 = pneg %p55
        %p302 = pneg %p52
        %p303 = pneg %p76
        %p304 = pneg %p73
        %p305 = pneg %p97
        %p306 = pneg %p94
        %p307 = pneg %p118
        %p308 = pneg %p115
        %p309 = pneg %p139
        %p310 = pneg %p136
        %s311 = sand.u32 %s22, 1
        %s312 = scalar_lea.sflag [#allocation4], %s311
        %s313 = sand.u32 %s152, 1
        %s314 = smul.addr %s313, 256
        %s315 = scalar_lea.vmem [#allocation8], %s314
        %p316 = pneg %p165
        %p317 = pneg %p162
        %p318 = pneg %p193
        %p319 = pneg %p190
        %s320 = sand.u32 %s180, 1
        %s321 = scalar_lea.sflag [#allocation5], %s320
        %s322 = sand.u32 %s180, 1
        %s323 = smul.addr %s322, 32
        %s324 = scalar_lea.vmem [#allocation9], %s323
        %s325 = smul.u32 2, %s26
        %s326 = smul.u32 32, %s27
        %s327 = ssub.s32 75, %s326
        %p328 = scmp.lt.s32.totalorder %s327, 32
        %s329 = scalar_select %p328, %s327, 32
        %s330 = smul.u32 128, %s329
        %s331 = smul.u32 2, %s26
        %s332 = smul.u32 2, %s27
        %s333 = ssub.s32 5, %s332
        %p334 = scmp.lt.s32.totalorder %s333, 2
        %s335 = scalar_select %p334, %s333, 2
        %s336 = smul.u32 256, %s335
        %p337 = scmp.eq.s32.totalorder %s27, 0
        // Predicated region
        $region57: #{tpu_custom_call.1} parent=43 // pred_check
          %p338 = pneg %p337
        $region58: #{tpu_custom_call.1} parent=43 // pred_check_branch
          %340 = sbr.rel (%p338) target = $region60
        $region59: #{tpu_custom_call.1} parent=43 // pred_region
          %v341 = vld [vmem:[#allocation3] sm:$0xff]
          %v342 = vld [vmem:[#allocation3 + $0x8] sm:$0xff]
          %v343 = vld [vmem:[#allocation6] sm:$0xff]
          %v344 = vld [vmem:[#allocation6 + $0x8] sm:$0xff]
          %v345 = vld [vmem:[#allocation6 + $0x10] sm:$0xff]
          %v346 = vld [vmem:[#allocation6 + $0x18] sm:$0xff]
          %v347 = vld [vmem:[#allocation6 + $0x20] sm:$0xff]
          %v348 = vld [vmem:[#allocation6 + $0x28] sm:$0xff]
          %v349 = vld [vmem:[#allocation6 + $0x30] sm:$0xff]
          %v350 = vld [vmem:[#allocation6 + $0x38] sm:$0xff]
          %v351 = vld [vmem:[#allocation6 + $0x40] sm:$0xff]
          %v352 = vld [vmem:[#allocation6 + $0x48] sm:$0xff]
          %v353 = vld [vmem:[#allocation6 + $0x50] sm:$0xff]
          %v354 = vld [vmem:[#allocation6 + $0x58] sm:$0xff]
          %v355 = vld [vmem:[#allocation6 + $0x60] sm:$0xff]
          %v356 = vld [vmem:[#allocation6 + $0x68] sm:$0xff]
          %v357 = vld [vmem:[#allocation6 + $0x70] sm:$0xff]
          %v358 = vld [vmem:[#allocation6 + $0x78] sm:$0xff]
          %v359 = vld [vmem:[%s2] sm:$0x1]
          %v361 = vlaneseq
          %v362 = vshrl.u32 %v361, 7
          %v363 = vsub.s32 0, %v362
          %v364 = vrot.slane %v359, %v363
          %366 = vmatprep.subr.mxu0 0.0
          %367 = vmatpush1.xpose.msra.mxu0 %v343
          %368 = vmatprep.subr.mxu0 0.0
          %369 = vmatpush1.xpose.msra.mxu0 %v344
          %370 = vmatprep.subr.mxu0 0.0
          %371 = vmatpush1.xpose.msra.mxu0 %v345
          %372 = vmatprep.subr.mxu0 0.0
          %373 = vmatpush1.xpose.msra.mxu0 %v346
          %374 = vmatprep.subr.mxu0 0.0
          %375 = vmatpush1.xpose.msra.mxu0 %v347
          %376 = vmatprep.subr.mxu0 0.0
          %377 = vmatpush1.xpose.msra.mxu0 %v348
          %378 = vmatprep.subr.mxu0 0.0
          %379 = vmatpush1.xpose.msra.mxu0 %v349
          %380 = vmatprep.subr.mxu0 0.0
          %381 = vmatpush1.xpose.msra.mxu0 %v350
          %382 = vmatprep.subr.mxu0 0.0
          %383 = vmatpush1.xpose.msra.mxu0 %v351
          %384 = vmatprep.subr.mxu0 0.0
          %385 = vmatpush1.xpose.msra.mxu0 %v352
          %386 = vmatprep.subr.mxu0 0.0
          %387 = vmatpush1.xpose.msra.mxu0 %v353
          %388 = vmatprep.subr.mxu0 0.0
          %389 = vmatpush1.xpose.msra.mxu0 %v354
          %390 = vmatprep.subr.mxu0 0.0
          %391 = vmatpush1.xpose.msra.mxu0 %v355
          %392 = vmatprep.subr.mxu0 0.0
          %393 = vmatpush1.xpose.msra.mxu0 %v356
          %394 = vmatprep.subr.mxu0 0.0
          %395 = vmatpush1.xpose.msra.mxu0 %v357
          %396 = vmatprep.subr.mxu0 0.0
          %397 = vmatpush1.xpose.msra.mxu0 %v358
          %398 = vmatprep.subr.mxu0 0.0
          %399 = vmatpush1.xpose.msra.mxu0 0.0
          %400 = vmatprep.subr.mxu0 0.0
          %401 = vmatpush1.xpose.msra.mxu0 0.0
          %402 = vmatprep.subr.mxu0 0.0
          %403 = vmatpush1.xpose.msra.mxu0 0.0
          %404 = vmatprep.subr.mxu0 0.0
          %405 = vmatpush1.xpose.msra.mxu0 0.0
          %406 = vmatprep.subr.mxu0 0.0
          %407 = vmatpush1.xpose.msra.mxu0 0.0
          %408 = vmatprep.subr.mxu0 0.0
          %409 = vmatpush1.xpose.msra.mxu0 0.0
          %410 = vmatprep.subr.mxu0 0.0
          %411 = vmatpush1.xpose.msra.mxu0 0.0
          %412 = vmatprep.subr.mxu0 0.0
          %413 = vmatpush1.xpose.msra.mxu0 0.0
          %414 = vmatprep.subr.mxu0 0.0
          %415 = vmatpush1.xpose.msra.mxu0 0.0
          %416 = vmatprep.subr.mxu0 0.0
          %417 = vmatpush1.xpose.msra.mxu0 0.0
          %418 = vmatprep.subr.mxu0 0.0
          %419 = vmatpush1.xpose.msra.mxu0 0.0
          %420 = vmatprep.subr.mxu0 0.0
          %421 = vmatpush1.xpose.msra.mxu0 0.0
          %422 = vmatprep.subr.mxu0 0.0
          %423 = vmatpush1.xpose.msra.mxu0 0.0
          %424 = vmatprep.subr.mxu0 0.0
          %425 = vmatpush1.xpose.msra.mxu0 0.0
          %426 = vmatprep.subr.mxu0 0.0
          %427 = vmatpush1.xpose.msra.mxu0 0.0
          %428 = vmatprep.subr.mxu0 0.0
          %429 = vmatpush1.xpose.msra.mxu0 0.0
          %430 = vmatprep.mubr.f32.mxu0 0.0
          %431 = vmatmul.mubr.f32.gmra.mrb[0].mxu0 %v341
          %v432 = vpop.f32.mrb[0].mxu0
          %v433 = vadd.f32 %v364, %v432
          %v434 = vpop.f32.mrb[0].mxu0
          %435 = vmatprep.mubr.f32.mxu0 0.0
          %436 = vmatmul.mubr.f32.gmra.mrb[0].mxu0 %v342
          %v437 = vpop.f32.mrb[0].mxu0
          %v438 = vadd.f32 %v364, %v437
          %v439 = vpop.f32.mrb[0].mxu0
          %440 = vdwg.mxu0
          %v441 = vmul.f32 %v433, 0.5
          %v442 = vmul.f32 %v438, 0.5
          %v443 = vmul.f32 %v433, 0.70710677
          %v444 = vmul.f32 %v438, 0.70710677
          %v445 = verf.f32.pop %v443
          %v446 = verf.f32.pop %v444
          %v447 = vadd.f32 %v445, 1.0
          %v448 = vadd.f32 %v446, 1.0
          %v449 = vmul.f32 %v441, %v447
          %v450 = vmul.f32 %v442, %v448
          %451 = vadd.xlane.f32.xlu0 %v449
          %v452 = vpop.xlane.xlu0 %451
          %453 = vadd.xlane.f32.xlu0 %v450
          %v454 = vpop.xlane.xlu0 %453
          %v455 = vrcp.pop 128.0
          %v456 = vmul.f32 %v452, %v455
          %v457 = vmul.f32 %v454, %v455
          %v458 = vsub.f32 %v449, %v456
          %v459 = vsub.f32 %v450, %v457
          %v460 = vmul.f32 %v458, %v458
          %v461 = vmul.f32 %v459, %v459
          %462 = vadd.xlane.f32.xlu0 %v460
          %v463 = vpop.xlane.xlu0 %462
          %464 = vadd.xlane.f32.xlu0 %v461
          %v465 = vpop.xlane.xlu0 %464
          %v466 = vmul.f32 %v463, %v455
          %v467 = vmul.f32 %v465, %v455
          %v468 = vadd.f32 %v466, 1e-12
          %v469 = vadd.f32 %v467, 1e-12
          %v470 = vrsqrt.pop %v468
          %v471 = vrsqrt.pop %v469
          %v472 = vmul.f32 %v458, %v470
          %v473 = vmul.f32 %v459, %v471
          %v474 = vld [vmem:[%s3] sm:$0x1]
          %v476 = vlaneseq
          %v477 = vshrl.u32 %v476, 7
          %v478 = vsub.s32 0, %v477
          %v479 = vrot.slane %v474, %v478
          %v481 = vmul.f32 %v472, %v479
          %v482 = vmul.f32 %v473, %v479
          %v483 = vld [vmem:[%s4] sm:$0x1]
          %v485 = vlaneseq
          %v486 = vshrl.u32 %v485, 7
          %v487 = vsub.s32 0, %v486
          %v488 = vrot.slane %v483, %v487
          %v490 = vadd.f32 %v481, %v488
          %v491 = vadd.f32 %v482, %v488
          %492 = vst [vmem:[#allocation2] sm:$0xff] %v490
          %493 = vst [vmem:[#allocation2 + $0x8] sm:$0xff] %v491
        $region60: #{tpu_custom_call.1} parent=43 // pred_fallthru
          _
        %v494 = vld [vmem:[#allocation2] sm:$0xff]
        %v495 = vld [vmem:[#allocation2 + $0x8] sm:$0xff]
        %v496 = vld [vmem:[%s296] sm:$0xff]
        %v497 = vld [vmem:[%s296 + $0x8] sm:$0xff]
        %v498 = vld [vmem:[%s296 + $0x10] sm:$0xff]
        %v499 = vld [vmem:[%s296 + $0x18] sm:$0xff]
        %v500 = vld [vmem:[%s296 + $0x20] sm:$0xff]
        %v501 = vld [vmem:[%s296 + $0x28] sm:$0xff]
        %v502 = vld [vmem:[%s296 + $0x30] sm:$0xff]
        %v503 = vld [vmem:[%s296 + $0x38] sm:$0xff]
        %v504 = vld [vmem:[%s296 + $0x40] sm:$0xff]
        %v505 = vld [vmem:[%s296 + $0x48] sm:$0xff]
        %v506 = vld [vmem:[%s296 + $0x50] sm:$0xff]
        %v507 = vld [vmem:[%s296 + $0x58] sm:$0xff]
        %v508 = vld [vmem:[%s296 + $0x60] sm:$0xff]
        %v509 = vld [vmem:[%s296 + $0x68] sm:$0xff]
        %v510 = vld [vmem:[%s296 + $0x70] sm:$0xff]
        %v511 = vld [vmem:[%s296 + $0x78] sm:$0xff]
        %v512 = vld [vmem:[%s296 + $0x80] sm:$0xff]
        %v513 = vld [vmem:[%s296 + $0x88] sm:$0xff]
        %v514 = vld [vmem:[%s296 + $0x90] sm:$0xff]
        %v515 = vld [vmem:[%s296 + $0x98] sm:$0xff]
        %v516 = vld [vmem:[%s296 + $0xa0] sm:$0xff]
        %v517 = vld [vmem:[%s296 + $0xa8] sm:$0xff]
        %v518 = vld [vmem:[%s296 + $0xb0] sm:$0xff]
        %v519 = vld [vmem:[%s296 + $0xb8] sm:$0xff]
        %v520 = vld [vmem:[%s296 + $0xc0] sm:$0xff]
        %v521 = vld [vmem:[%s296 + $0xc8] sm:$0xff]
        %v522 = vld [vmem:[%s296 + $0xd0] sm:$0xff]
        %v523 = vld [vmem:[%s296 + $0xd8] sm:$0xff]
        %v524 = vld [vmem:[%s296 + $0xe0] sm:$0xff]
        %v525 = vld [vmem:[%s296 + $0xe8] sm:$0xff]
        %v526 = vld [vmem:[%s296 + $0xf0] sm:$0xff]
        %v527 = vld [vmem:[%s296 + $0xf8] sm:$0xff]
        %528 = vmatprep.subr.mxu0 0.0
        %529 = vmatpush1.xpose.msra.mxu0 %v496
        %530 = vmatprep.subr.mxu0 0.0
        %531 = vmatpush1.xpose.msra.mxu0 %v497
        %532 = vmatprep.subr.mxu0 0.0
        %533 = vmatpush1.xpose.msra.mxu0 %v498
        %534 = vmatprep.subr.mxu0 0.0
        %535 = vmatpush1.xpose.msra.mxu0 %v499
        %536 = vmatprep.subr.mxu0 0.0
        %537 = vmatpush1.xpose.msra.mxu0 %v500
        %538 = vmatprep.subr.mxu0 0.0
        %539 = vmatpush1.xpose.msra.mxu0 %v501
        %540 = vmatprep.subr.mxu0 0.0
        %541 = vmatpush1.xpose.msra.mxu0 %v502
        %542 = vmatprep.subr.mxu0 0.0
        %543 = vmatpush1.xpose.msra.mxu0 %v503
        %544 = vmatprep.subr.mxu0 0.0
        %545 = vmatpush1.xpose.msra.mxu0 %v504
        %546 = vmatprep.subr.mxu0 0.0
        %547 = vmatpush1.xpose.msra.mxu0 %v505
        %548 = vmatprep.subr.mxu0 0.0
        %549 = vmatpush1.xpose.msra.mxu0 %v506
        %550 = vmatprep.subr.mxu0 0.0
        %551 = vmatpush1.xpose.msra.mxu0 %v507
        %552 = vmatprep.subr.mxu0 0.0
        %553 = vmatpush1.xpose.msra.mxu0 %v508
        %554 = vmatprep.subr.mxu0 0.0
        %555 = vmatpush1.xpose.msra.mxu0 %v509
        %556 = vmatprep.subr.mxu0 0.0
        %557 = vmatpush1.xpose.msra.mxu0 %v510
        %558 = vmatprep.subr.mxu0 0.0
        %559 = vmatpush1.xpose.msra.mxu0 %v511
        %560 = vmatprep.subr.mxu0 0.0
        %561 = vmatpush1.xpose.msra.mxu0 %v512
        %562 = vmatprep.subr.mxu0 0.0
        %563 = vmatpush1.xpose.msra.mxu0 %v513
        %564 = vmatprep.subr.mxu0 0.0
        %565 = vmatpush1.xpose.msra.mxu0 %v514
        %566 = vmatprep.subr.mxu0 0.0
        %567 = vmatpush1.xpose.msra.mxu0 %v515
        %568 = vmatprep.subr.mxu0 0.0
        %569 = vmatpush1.xpose.msra.mxu0 %v516
        %570 = vmatprep.subr.mxu0 0.0
        %571 = vmatpush1.xpose.msra.mxu0 %v517
        %572 = vmatprep.subr.mxu0 0.0
        %573 = vmatpush1.xpose.msra.mxu0 %v518
        %574 = vmatprep.subr.mxu0 0.0
        %575 = vmatpush1.xpose.msra.mxu0 %v519
        %576 = vmatprep.subr.mxu0 0.0
        %577 = vmatpush1.xpose.msra.mxu0 %v520
        %578 = vmatprep.subr.mxu0 0.0
        %579 = vmatpush1.xpose.msra.mxu0 %v521
        %580 = vmatprep.subr.mxu0 0.0
        %581 = vmatpush1.xpose.msra.mxu0 %v522
        %582 = vmatprep.subr.mxu0 0.0
        %583 = vmatpush1.xpose.msra.mxu0 %v523
        %584 = vmatprep.subr.mxu0 0.0
        %585 = vmatpush1.xpose.msra.mxu0 %v524
        %586 = vmatprep.subr.mxu0 0.0
        %587 = vmatpush1.xpose.msra.mxu0 %v525
        %588 = vmatprep.subr.mxu0 0.0
        %589 = vmatpush1.xpose.msra.mxu0 %v526
        %590 = vmatprep.subr.mxu0 0.0
        %591 = vmatpush1.xpose.msra.mxu0 %v527
        %592 = vmatprep.mubr.f32.mxu0 0.0
        %593 = vmatmul.mubr.f32.gmra.mrb[0].mxu0 %v494
        %v594 = vpop.f32.mrb[0].mxu0
        %v595 = vadd.f32 0.0, %v594
        %v596 = vpop.f32.mrb[0].mxu0
        %v597 = vadd.f32 0.0, %v596
        %598 = vmatprep.mubr.f32.mxu0 0.0
        %599 = vmatmul.mubr.f32.gmra.mrb[0].mxu0 %v495
        %v600 = vpop.f32.mrb[0].mxu0
        %v601 = vadd.f32 0.0, %v600
        %v602 = vpop.f32.mrb[0].mxu0
        %v603 = vadd.f32 0.0, %v602
        %604 = vdwg.mxu0
        %605 = vst [vmem:[%s324] sm:$0xff] %v595
        %606 = vst [vmem:[%s324 + $0x8] sm:$0xff] %v597
        %607 = vst [vmem:[%s324 + $0x10] sm:$0xff] %v601
        %608 = vst [vmem:[%s324 + $0x18] sm:$0xff] %v603
        %s609 = sand.u32 %s180, 1
        %s610 = scalar_lea.sflag [#allocation5], %s609
        %s611 = sand.u32 %s180, 1
        %s612 = smul.addr %s611, 32
        %s613 = scalar_lea.vmem [#allocation9], %s612
        // Predicated region
        $region61: #{tpu_custom_call.1} parent=43 // pred_check
          %p614 = pneg %p190
        $region62: #{tpu_custom_call.1} parent=43 // pred_check_branch
          %616 = sbr.rel (%p614) target = $region64
        $region63: #{tpu_custom_call.1} parent=43 // pred_region
          %s617 = smul.u32 2, %s26
          %s618 = smul.u32 2, %s27
          %s619 = ssub.s32 5, %s618
          %p620 = scmp.lt.s32.totalorder %s619, 2
          %s621 = scalar_select %p620, %s619, 2
          %s622 = smul.u32 256, %s621
          %s624 = ssub.s32 512, %s622
          %625 = vsyncadd %s610, %s624
          %p626 = scmp.ne.s32.totalorder 0, %s622
          %s627 = smul.addr %s617, 5
          %s628 = sadd.s32 %s618, %s627
          %s629 = smul.addr %s628, 128
          %s630 = scalar_lea.hbm %s6, %s629
          %s631 = smul.u32 %s621, 8
          %s632 = smul.u32 %s631, 2
          %s633 = sshll.u32 %s613, 4
          %s634 = int_to_ptr.vmem [resolvable:$true] %s633
          %s635 = sshll.u32 %s632, 4
          %639 = dma.vmem_to_hbm [thread:$0]  (%p626), %s634, %s635, %s630, %s610, 256, 640, %s631
        $region64: #{tpu_custom_call.1} parent=43 // pred_fallthru
          _
      $region44: #{tpu_custom_call.1} parent=5 // pred_fallthru
        _
      %p640 = scmp.le.s32.totalorder 2, %s17
      // Predicated region
      $region65: #{tpu_custom_call.1} parent=5 // pred_check
        %p641 = pneg %p640
      $region66: #{tpu_custom_call.1} parent=5 // pred_check_branch
        %643 = sbr.rel (%p641) target = $region68
      $region67: #{tpu_custom_call.1} parent=5 // pred_region
        %s644 = ssub.s32 %s17, 2
        // Predicated region
        $region69: #{tpu_custom_call.1} parent=67 // pred_check
          %p645 = pneg %p196
        $region70: #{tpu_custom_call.1} parent=67 // pred_check_branch
          %647 = sbr.rel (%p645) target = $region72
        $region71: #{tpu_custom_call.1} parent=67 // pred_region
          %s648 = sand.u32 %s181, 1
          %s649 = scalar_lea.sflag [#allocation5], %s648
          %s650 = sand.u32 %s181, 1
          %s651 = smul.addr %s650, 32
          %s652 = scalar_lea.vmem [#allocation9], %s651
          %653 = dma.done %s649, 512
        $region72: #{tpu_custom_call.1} parent=67 // pred_fallthru
          _
      $region68: #{tpu_custom_call.1} parent=5 // pred_fallthru
        _
    $region6: #{tpu_custom_call.1} parent=1 // loop_footer
      %s21 = sadd.s32 1, %s17
    $region7: #{tpu_custom_call.1} parent=1 // loop_footer_branch
      %16 = sbr.rel target = $region3
    $region8: #{tpu_custom_call.1} parent=1 // loop_exit
      _
    %654 = vsyncpa [#allocation4], 1
    %s655 = scalar_lea.sflag [#allocation4], 1
    %656 = vsyncpa %s655, 1
    %657 = vsyncpa [#allocation7], 1
    %658 = vsyncpa [#allocation5], 1
    %s659 = scalar_lea.sflag [#allocation5], 1
    %660 = vsyncpa %s659, 1

// kernel: tpu_custom_call.1
$region0: #{tpu_custom_call.1}
  #allocation0 [shape = 'u32[]', space=smem, size = 0x4, offset = 0x4, fixed_abs, tag = 'smem constant byte address 0x4 - core index']
  #allocation1 [shape = 'u32[144,128]{1,0:T(1,128)}', space=vmem, size = 0x12000, scoped, tag = 'internal scratch']
  #allocation2 [shape = 'f32[16,128]{1,0:T(8,128)}', space=vmem, size = 0x2000, scoped, tag = 'scratch operand']
  %s0 = inlined_call_operand.hbm [shape: f32[16,128], index: 0, kind: input, shape index: {}]
  %s1 = inlined_call_operand.hbm [shape: f32[128,128], index: 1, kind: input, shape index: {}]
  %s2 = inlined_call_operand.vmem [shape: f32[1,128], index: 2, kind: input, shape index: {}]
  %s3 = inlined_call_operand.vmem [shape: f32[1,128], index: 3, kind: input, shape index: {}]
  %s4 = inlined_call_operand.vmem [shape: f32[1,128], index: 4, kind: input, shape index: {}]
  %s5 = inlined_call_operand.hbm [shape: f32[600,128], index: 5, kind: input, shape index: {}]
  %s6 = inlined_call_operand.hbm [shape: f32[16,600], index: 6, kind: output, shape index: {}]
  %s7 = sld [smem:[#allocation0]]
  $region73: #{tpu_custom_call.1} parent=0
    _
  %s9 = ssub.s32 1, %s7
  %s10 = scalar_select 0, %s9, %s7
  $region1: #{tpu_custom_call.1} parent=0
    #allocation3 [shape = 'u8[8192]{0}', space=vmem, size = 0x2000, scoped, tag = 'input window, operand 0, single buffered']
    #allocation4 [shape = 's32[2]{0}', space=sflag, size = 0x8, scoped, tag = 'scoped memory for tpu_custom_call.1']
    #allocation5 [shape = 's32[2]{0}', space=sflag, size = 0x8, scoped, tag = 'scoped memory for tpu_custom_call.1']
    #allocation6 [shape = 'u8[65536]{0}', space=vmem, size = 0x10000, scoped, tag = 'input window, operand 1, single buffered']
    #allocation7 [shape = 's32[1]{0}', space=sflag, size = 0x4, scoped, tag = 'scoped memory for tpu_custom_call.1']
    #allocation8 [shape = 'u8[262144]{0}', space=vmem, size = 0x40000, scoped, tag = 'input window, operand 5']
    #allocation9 [shape = 'u8[32768]{0}', space=vmem, size = 0x8000, scoped, tag = 'output window, operand 0']
    %11 = vsyncpa [#allocation4], 0
    %12 = vsyncpa [#allocation7], 0
    %13 = vsyncpa [#allocation5], 0
    %s14 = scalar_lea.sflag [#allocation5], 1
    %15 = vsyncpa %s14, 0
    loop: start=0, step=1, limit=5
    $region2: #{tpu_custom_call.1} parent=1 // loop_pre_header
      _
    $region3: #{tpu_custom_call.1} parent=1 // loop_header
      %s17 = sphi 0, %s21
      %p18 = scmp.ge.s32.totalorder %s17, 5
      %s24 = sphi 0, %s36
      %s25 = sphi 0, %s32
      %s26 = sphi 0, %s24
      %s27 = sphi 0, %s25
      %s28 = sphi 0, %s26
      %s29 = sphi 0, %s27
      %s39 = sphi 0, %s41
      %s42 = sphi 0, %s39
      %s43 = sphi 0, %s42
      %s59 = sphi 0, %s43
      %s63 = sphi 0, %s63
      %s65 = sphi 0, %s63
      %s66 = sphi 0, %s65
      %s80 = sphi 0, %s66
      %s84 = sphi 0, %s84
      %s86 = sphi 0, %s84
      %s87 = sphi 0, %s86
      %s101 = sphi 0, %s87
      %s105 = sphi 0, %s105
      %s107 = sphi 0, %s105
      %s108 = sphi 0, %s107
      %s122 = sphi 0, %s108
      %s126 = sphi 0, %s126
      %s128 = sphi 0, %s126
      %s129 = sphi 0, %s128
      %s143 = sphi 0, %s129
      %s149 = sphi 0, %s151
      %s152 = sphi 0, %s149
      %s153 = sphi 0, %s152
      %s169 = sphi 0, %s153
      %s177 = sphi 0, %s179
      %s180 = sphi 0, %s177
      %s181 = sphi 0, %s180
      %s197 = sphi 0, %s181
    $region4: #{tpu_custom_call.1} parent=1 // loop_header_branch
      %20 = sbr.rel (%p18) target = $region8
    $region5: #{tpu_custom_call.1} parent=1 // loop_body
      %s22 = ssub.s32 %s17, 1
      %s23 = ssub.s32 %s17, 2
      %s30 = sadd.s32 1, %s25
      %p31 = scmp.ge.s32.totalorder %s30, 3
      %s32 = scalar_select %p31, 0, %s30
      %s33 = sadd.s32 1, %s24
      %s34 = scalar_select %p31, %s33, %s24
      %p35 = scmp.ge.s32.totalorder %s34, 1
      %s36 = scalar_select %p35, 0, %s34
      %s37 = ssub.s32 %s24, %s36
      %p38 = scmp.eq.s32.totalorder %s37, 0
      %s40 = sadd.s32 %s39, 1
      %s41 = scalar_select %p38, %s39, %s40
      %p44 = pneg %p38
      %p45 = scmp.eq.s32.totalorder %s17, 2
      %p46 = por %p44, %p45
      %p47 = scmp.ne.s32.totalorder %s39, %s42
      %p48 = scmp.eq.s32.totalorder %s17, 0
      %p49 = por %p47, %p48
      %p50 = scmp.ne.s32.totalorder %s39, %s42
      %p51 = scmp.eq.s32.totalorder %s22, 2
      %p52 = por %p50, %p51
      %p53 = scmp.ne.s32.totalorder %s42, %s43
      %p54 = scmp.eq.s32.totalorder %s22, 0
      %p55 = por %p53, %p54
      %p56 = scmp.ne.s32.totalorder %s42, %s43
      %p57 = scmp.eq.s32.totalorder %s23, 2
      %p58 = por %p56, %p57
      %p60 = scmp.ne.s32.totalorder %s43, %s59
      %p61 = scmp.eq.s32.totalorder %s23, 0
      %p62 = por %p60, %p61
      %s64 = sadd.s32 %s63, 1
      %p67 = scmp.eq.s32.totalorder %s17, 2
      %p68 = scmp.ne.s32.totalorder %s63, %s65
      %p69 = scmp.eq.s32.totalorder %s17, 0
      %p70 = por %p68, %p69
      %p71 = scmp.ne.s32.totalorder %s63, %s65
      %p72 = scmp.eq.s32.totalorder %s22, 2
      %p73 = por %p71, %p72
      %p74 = scmp.ne.s32.totalorder %s65, %s66
      %p75 = scmp.eq.s32.totalorder %s22, 0
      %p76 = por %p74, %p75
      %p77 = scmp.ne.s32.totalorder %s65, %s66
      %p78 = scmp.eq.s32.totalorder %s23, 2
      %p79 = por %p77, %p78
      %p81 = scmp.ne.s32.totalorder %s66, %s80
      %p82 = scmp.eq.s32.totalorder %s23, 0
      %p83 = por %p81, %p82
      %s85 = sadd.s32 %s84, 1
      %p88 = scmp.eq.s32.totalorder %s17, 2
      %p89 = scmp.ne.s32.totalorder %s84, %s86
      %p90 = scmp.eq.s32.totalorder %s17, 0
      %p91 = por %p89, %p90
      %p92 = scmp.ne.s32.totalorder %s84, %s86
      %p93 = scmp.eq.s32.totalorder %s22, 2
      %p94 = por %p92, %p93
      %p95 = scmp.ne.s32.totalorder %s86, %s87
      %p96 = scmp.eq.s32.totalorder %s22, 0
      %p97 = por %p95, %p96
      %p98 = scmp.ne.s32.totalorder %s86, %s87
      %p99 = scmp.eq.s32.totalorder %s23, 2
      %p100 = por %p98, %p99
      %p102 = scmp.ne.s32.totalorder %s87, %s101
      %p103 = scmp.eq.s32.totalorder %s23, 0
      %p104 = por %p102, %p103
      %s106 = sadd.s32 %s105, 1
      %p109 = scmp.eq.s32.totalorder %s17, 2
      %p110 = scmp.ne.s32.totalorder %s105, %s107
      %p111 = scmp.eq.s32.totalorder %s17, 0
      %p112 = por %p110, %p111
      %p113 = scmp.ne.s32.totalorder %s105, %s107
      %p114 = scmp.eq.s32.totalorder %s22, 2
      %p115 = por %p113, %p114
      %p116 = scmp.ne.s32.totalorder %s107, %s108
      %p117 = scmp.eq.s32.totalorder %s22, 0
      %p118 = por %p116, %p117
      %p119 = scmp.ne.s32.totalorder %s107, %s108
      %p120 = scmp.eq.s32.totalorder %s23, 2
      %p121 = por %p119, %p120
      %p123 = scmp.ne.s32.totalorder %s108, %s122
      %p124 = scmp.eq.s32.totalorder %s23, 0
      %p125 = por %p123, %p124
      %s127 = sadd.s32 %s126, 1
      %p130 = scmp.eq.s32.totalorder %s17, 2
      %p131 = scmp.ne.s32.totalorder %s126, %s128
      %p132 = scmp.eq.s32.totalorder %s17, 0
      %p133 = por %p131, %p132
      %p134 = scmp.ne.s32.totalorder %s126, %s128
      %p135 = scmp.eq.s32.totalorder %s22, 2
      %p136 = por %p134, %p135
      %p137 = scmp.ne.s32.totalorder %s128, %s129
      %p138 = scmp.eq.s32.totalorder %s22, 0
      %p139 = por %p137, %p138
      %p140 = scmp.ne.s32.totalorder %s128, %s129
      %p141 = scmp.eq.s32.totalorder %s23, 2
      %p142 = por %p140, %p141
      %p144 = scmp.ne.s32.totalorder %s129, %s143
      %p145 = scmp.eq.s32.totalorder %s23, 0
      %p146 = por %p144, %p145
      %s147 = ssub.s32 %s25, %s32
      %p148 = scmp.eq.s32.totalorder %s147, 0
      %s150 = sadd.s32 %s149, 1
      %s151 = scalar_select %p148, %s149, %s150
      %p154 = pneg %p148
      %p155 = scmp.eq.s32.totalorder %s17, 2
      %p156 = por %p154, %p155
      %p157 = scmp.ne.s32.totalorder %s149, %s152
      %p158 = scmp.eq.s32.totalorder %s17, 0
      %p159 = por %p157, %p158
      %p160 = scmp.ne.s32.totalorder %s149, %s152
      %p161 = scmp.eq.s32.totalorder %s22, 2
      %p162 = por %p160, %p161
      %p163 = scmp.ne.s32.totalorder %s152, %s153
      %p164 = scmp.eq.s32.totalorder %s22, 0
      %p165 = por %p163, %p164
      %p166 = scmp.ne.s32.totalorder %s152, %s153
      %p167 = scmp.eq.s32.totalorder %s23, 2
      %p168 = por %p166, %p167
      %p170 = scmp.ne.s32.totalorder %s153, %s169
      %p171 = scmp.eq.s32.totalorder %s23, 0
      %p172 = por %p170, %p171
      %s173 = ssub.s32 %s24, %s36
      %s174 = ssub.s32 %s25, %s32
      %s175 = sor.u32 %s173, %s174
      %p176 = scmp.eq.s32.totalorder %s175, 0
      %s178 = sadd.s32 %s177, 1
      %s179 = scalar_select %p176, %s177, %s178
      %p182 = pneg %p176
      %p183 = scmp.eq.s32.totalorder %s17, 2
      %p184 = por %p182, %p183
      %p185 = scmp.ne.s32.totalorder %s177, %s180
      %p186 = scmp.eq.s32.totalorder %s17, 0
      %p187 = por %p185, %p186
      %p188 = scmp.ne.s32.totalorder %s177, %s180
      %p189 = scmp.eq.s32.totalorder %s22, 2
      %p190 = por %p188, %p189
      %p191 = scmp.ne.s32.totalorder %s180, %s181
      %p192 = scmp.eq.s32.totalorder %s22, 0
      %p193 = por %p191, %p192
      %p194 = scmp.ne.s32.totalorder %s180, %s181
      %p195 = scmp.eq.s32.totalorder %s23, 2
      %p196 = por %p194, %p195
      %p198 = scmp.ne.s32.totalorder %s181, %s197
      %p199 = scmp.eq.s32.totalorder %s23, 0
      %p200 = por %p198, %p199
      %p201 = scmp.le.s32.totalorder 1, %s17
      %p202 = scmp.lt.s32.totalorder %s17, 4
      %p203 = pnand %p201, %p202
      %p204 = pneg %p203
      // Predicated region
      $region9: #{tpu_custom_call.1} parent=5 // pred_check
        _
      $region10: #{tpu_custom_call.1} parent=5 // pred_check_branch
        %206 = sbr.rel (%p203) target = $region12
      $region11: #{tpu_custom_call.1} parent=5 // pred_region
        %s207 = ssub.s32 %s17, 1
        // Predicated region
        $region13: #{tpu_custom_call.1} parent=11 // pred_check
          %p208 = pneg %p55
        $region14: #{tpu_custom_call.1} parent=11 // pred_check_branch
          %210 = sbr.rel (%p208) target = $region16
        $region15: #{tpu_custom_call.1} parent=11 // pred_region
          %s211 = smul.u32 2, %s26
          %s213 = ssub.s32 256, 256
          %214 = vsyncadd [#allocation4], %s213
          %s215 = smul.addr %s211, 128
          %s216 = scalar_lea.hbm %s0, %s215
          %s217 = sshll.u32 [#allocation3], 4
          %s218 = int_to_ptr.vmem [resolvable:$true] %s217
          %223 = dma.hbm_to_vmem [thread:$0]  %s216, 256, %s218, [#allocation4], 128, 128, 8
        $region16: #{tpu_custom_call.1} parent=11 // pred_fallthru
          _
        // Predicated region
        $region17: #{tpu_custom_call.1} parent=11 // pred_check
          %p224 = pneg %p76
        $region18: #{tpu_custom_call.1} parent=11 // pred_check_branch
          %226 = sbr.rel (%p224) target = $region20
        $region19: #{tpu_custom_call.1} parent=11 // pred_region
          %s228 = ssub.s32 2048, 2048
          %229 = vsyncadd [#allocation7], %s228
          %s230 = sshll.u32 [#allocation6], 4
          %s231 = int_to_ptr.vmem [resolvable:$true] %s230
          %236 = dma.hbm_to_vmem [thread:$0]  %s1, 2048, %s231, [#allocation7], 128, 128, 8
        $region20: #{tpu_custom_call.1} parent=11 // pred_fallthru
          _
        // Predicated region
        $region21: #{tpu_custom_call.1} parent=11 // pred_check
          %p237 = pneg %p97
        $region22: #{tpu_custom_call.1} parent=11 // pred_check_branch
          %239 = sbr.rel (%p237) target = $region24
        $region23: #{tpu_custom_call.1} parent=11 // pred_region
          _
        $region24: #{tpu_custom_call.1} parent=11 // pred_fallthru
          _
        // Predicated region
        $region25: #{tpu_custom_call.1} parent=11 // pred_check
          %p240 = pneg %p118
        $region26: #{tpu_custom_call.1} parent=11 // pred_check_branch
          %242 = sbr.rel (%p240) target = $region28
        $region27: #{tpu_custom_call.1} parent=11 // pred_region
          _
        $region28: #{tpu_custom_call.1} parent=11 // pred_fallthru
          _
        // Predicated region
        $region29: #{tpu_custom_call.1} parent=11 // pred_check
          %p243 = pneg %p139
        $region30: #{tpu_custom_call.1} parent=11 // pred_check_branch
          %245 = sbr.rel (%p243) target = $region32
        $region31: #{tpu_custom_call.1} parent=11 // pred_region
          _
        $region32: #{tpu_custom_call.1} parent=11 // pred_fallthru
          _
      $region12: #{tpu_custom_call.1} parent=5 // pred_fallthru
        _
      %p246 = scmp.lt.s32.totalorder %s17, 3
      // Predicated region
      $region33: #{tpu_custom_call.1} parent=5 // pred_check
        %p247 = pneg %p246
      $region34: #{tpu_custom_call.1} parent=5 // pred_check_branch
        %249 = sbr.rel (%p247) target = $region36
      $region35: #{tpu_custom_call.1} parent=5 // pred_region
        // Predicated region
        $region37: #{tpu_custom_call.1} parent=35 // pred_check
          %p250 = pneg %p159
        $region38: #{tpu_custom_call.1} parent=35 // pred_check_branch
          %252 = sbr.rel (%p250) target = $region40
        $region39: #{tpu_custom_call.1} parent=35 // pred_region
          %s253 = sand.u32 %s17, 1
          %s254 = scalar_lea.sflag [#allocation4], %s253
          %s255 = sand.u32 %s149, 1
          %s256 = smul.addr %s255, 256
          %s257 = scalar_lea.vmem [#allocation8], %s256
          %s258 = smul.u32 32, %s25
          %s259 = ssub.s32 75, %s258
          %p260 = scmp.lt.s32.totalorder %s259, 32
          %s261 = scalar_select %p260, %s259, 32
          %s262 = smul.u32 128, %s261
          %s264 = ssub.s32 4096, %s262
          %265 = vsyncadd %s254, %s264
          %p266 = scmp.ne.s32.totalorder 0, %s262
          %s267 = smul.addr %s258, 128
          %s268 = scalar_lea.hbm %s5, %s267
          %s269 = smul.u32 8, %s261
          %s270 = sshll.u32 %s257, 4
          %s271 = int_to_ptr.vmem [resolvable:$true] %s270
          %s272 = sshll.u32 %s269, 4
          %276 = dma.hbm_to_vmem [thread:$0]  (%p266), %s268, %s272, %s271, %s254, 128, 128, 8
        $region40: #{tpu_custom_call.1} parent=35 // pred_fallthru
          _
      $region36: #{tpu_custom_call.1} parent=5 // pred_fallthru
        _
      %p277 = scmp.le.s32.totalorder 1, %s17
      %p278 = scmp.lt.s32.totalorder %s17, 4
      %p279 = pnand %p277, %p278
      %p280 = pneg %p279
      // Predicated region
      $region41: #{tpu_custom_call.1} parent=5 // pred_check
        _
      $region42: #{tpu_custom_call.1} parent=5 // pred_check_branch
        %282 = sbr.rel (%p279) target = $region44
      $region43: #{tpu_custom_call.1} parent=5 // pred_region
        %s283 = ssub.s32 %s17, 1
        // Predicated region
        $region45: #{tpu_custom_call.1} parent=43 // pred_check
          %p284 = pneg %p55
        $region46: #{tpu_custom_call.1} parent=43 // pred_check_branch
          %286 = sbr.rel (%p284) target = $region48
        $region47: #{tpu_custom_call.1} parent=43 // pred_region
          %287 = dma.done [#allocation4], 256
        $region48: #{tpu_custom_call.1} parent=43 // pred_fallthru
          _
        // Predicated region
        $region49: #{tpu_custom_call.1} parent=43 // pred_check
          %p288 = pneg %p76
        $region50: #{tpu_custom_call.1} parent=43 // pred_check_branch
          %290 = sbr.rel (%p288) target = $region52
        $region51: #{tpu_custom_call.1} parent=43 // pred_region
          %291 = dma.done [#allocation7], 2048
        $region52: #{tpu_custom_call.1} parent=43 // pred_fallthru
          _
        %s292 = sand.u32 %s22, 1
        %s293 = scalar_lea.sflag [#allocation4], %s292
        %s294 = sand.u32 %s152, 1
        %s295 = smul.addr %s294, 256
        %s296 = scalar_lea.vmem [#allocation8], %s295
        // Predicated region
        $region53: #{tpu_custom_call.1} parent=43 // pred_check
          %p297 = pneg %p165
        $region54: #{tpu_custom_call.1} parent=43 // pred_check_branch
          %299 = sbr.rel (%p297) target = $region56
        $region55: #{tpu_custom_call.1} parent=43 // pred_region
          %300 = dma.done %s293, 4096
        $region56: #{tpu_custom_call.1} parent=43 // pred_fallthru
          _
        %p301 = pneg %p55
        %p302 = pneg %p52
        %p303 = pneg %p76
        %p304 = pneg %p73
        %p305 = pneg %p97
        %p306 = pneg %p94
        %p307 = pneg %p118
        %p308 = pneg %p115
        %p309 = pneg %p139
        %p310 = pneg %p136
        %s311 = sand.u32 %s22, 1
        %s312 = scalar_lea.sflag [#allocation4], %s311
        %s313 = sand.u32 %s152, 1
        %s314 = smul.addr %s313, 256
        %s315 = scalar_lea.vmem [#allocation8], %s314
        %p316 = pneg %p165
        %p317 = pneg %p162
        %p318 = pneg %p193
        %p319 = pneg %p190
        %s320 = sand.u32 %s180, 1
        %s321 = scalar_lea.sflag [#allocation5], %s320
        %s322 = sand.u32 %s180, 1
        %s323 = smul.addr %s322, 32
        %s324 = scalar_lea.vmem [#allocation9], %s323
        %s325 = smul.u32 2, %s26
        %s326 = smul.u32 32, %s27
        %s327 = ssub.s32 75, %s326
        %p328 = scmp.lt.s32.totalorder %s327, 32
        %s329 = scalar_select %p328, %s327, 32
        %s330 = smul.u32 128, %s329
        %s331 = smul.u32 2, %s26
        %s332 = smul.u32 2, %s27
        %s333 = ssub.s32 5, %s332
        %p334 = scmp.lt.s32.totalorder %s333, 2
        %s335 = scalar_select %p334, %s333, 2
        %s336 = smul.u32 256, %s335
        %p337 = scmp.eq.s32.totalorder %s27, 0
        // Predicated region
        $region57: #{tpu_custom_call.1} parent=43 // pred_check
          %p338 = pneg %p337
        $region58: #{tpu_custom_call.1} parent=43 // pred_check_branch
          %340 = sbr.rel (%p338) target = $region60
        $region59: #{tpu_custom_call.1} parent=43 // pred_region
          %v341 = vld [vmem:[#allocation3] sm:$0xff]
          %v342 = vld [vmem:[#allocation3 + $0x8] sm:$0xff]
          %v343 = vld [vmem:[#allocation6] sm:$0xff]
          %v344 = vld [vmem:[#allocation6 + $0x8] sm:$0xff]
          %v345 = vld [vmem:[#allocation6 + $0x10] sm:$0xff]
          %v346 = vld [vmem:[#allocation6 + $0x18] sm:$0xff]
          %v347 = vld [vmem:[#allocation6 + $0x20] sm:$0xff]
          %v348 = vld [vmem:[#allocation6 + $0x28] sm:$0xff]
          %v349 = vld [vmem:[#allocation6 + $0x30] sm:$0xff]
          %v350 = vld [vmem:[#allocation6 + $0x38] sm:$0xff]
          %v351 = vld [vmem:[#allocation6 + $0x40] sm:$0xff]
          %v352 = vld [vmem:[#allocation6 + $0x48] sm:$0xff]
          %v353 = vld [vmem:[#allocation6 + $0x50] sm:$0xff]
          %v354 = vld [vmem:[#allocation6 + $0x58] sm:$0xff]
          %v355 = vld [vmem:[#allocation6 + $0x60] sm:$0xff]
          %v356 = vld [vmem:[#allocation6 + $0x68] sm:$0xff]
          %v357 = vld [vmem:[#allocation6 + $0x70] sm:$0xff]
          %v358 = vld [vmem:[#allocation6 + $0x78] sm:$0xff]
          %v359 = vld [vmem:[%s2] sm:$0x1]
          %v361 = vlaneseq
          %v362 = vshrl.u32 %v361, 7
          %v363 = vsub.s32 0, %v362
          %v364 = vrot.slane %v359, %v363
          %366 = vmatprep.subr.mxu0 0.0
          %367 = vmatpush1.xpose.msra.mxu0 %v343
          %368 = vmatprep.subr.mxu0 0.0
          %369 = vmatpush1.xpose.msra.mxu0 %v344
          %370 = vmatprep.subr.mxu0 0.0
          %371 = vmatpush1.xpose.msra.mxu0 %v345
          %372 = vmatprep.subr.mxu0 0.0
          %373 = vmatpush1.xpose.msra.mxu0 %v346
          %374 = vmatprep.subr.mxu0 0.0
          %375 = vmatpush1.xpose.msra.mxu0 %v347
          %376 = vmatprep.subr.mxu0 0.0
          %377 = vmatpush1.xpose.msra.mxu0 %v348
          %378 = vmatprep.subr.mxu0 0.0
          %379 = vmatpush1.xpose.msra.mxu0 %v349
          %380 = vmatprep.subr.mxu0 0.0
          %381 = vmatpush1.xpose.msra.mxu0 %v350
          %382 = vmatprep.subr.mxu0 0.0
          %383 = vmatpush1.xpose.msra.mxu0 %v351
          %384 = vmatprep.subr.mxu0 0.0
          %385 = vmatpush1.xpose.msra.mxu0 %v352
          %386 = vmatprep.subr.mxu0 0.0
          %387 = vmatpush1.xpose.msra.mxu0 %v353
          %388 = vmatprep.subr.mxu0 0.0
          %389 = vmatpush1.xpose.msra.mxu0 %v354
          %390 = vmatprep.subr.mxu0 0.0
          %391 = vmatpush1.xpose.msra.mxu0 %v355
          %392 = vmatprep.subr.mxu0 0.0
          %393 = vmatpush1.xpose.msra.mxu0 %v356
          %394 = vmatprep.subr.mxu0 0.0
          %395 = vmatpush1.xpose.msra.mxu0 %v357
          %396 = vmatprep.subr.mxu0 0.0
          %397 = vmatpush1.xpose.msra.mxu0 %v358
          %398 = vmatprep.subr.mxu0 0.0
          %399 = vmatpush1.xpose.msra.mxu0 0.0
          %400 = vmatprep.subr.mxu0 0.0
          %401 = vmatpush1.xpose.msra.mxu0 0.0
          %402 = vmatprep.subr.mxu0 0.0
          %403 = vmatpush1.xpose.msra.mxu0 0.0
          %404 = vmatprep.subr.mxu0 0.0
          %405 = vmatpush1.xpose.msra.mxu0 0.0
          %406 = vmatprep.subr.mxu0 0.0
          %407 = vmatpush1.xpose.msra.mxu0 0.0
          %408 = vmatprep.subr.mxu0 0.0
          %409 = vmatpush1.xpose.msra.mxu0 0.0
          %410 = vmatprep.subr.mxu0 0.0
          %411 = vmatpush1.xpose.msra.mxu0 0.0
          %412 = vmatprep.subr.mxu0 0.0
          %413 = vmatpush1.xpose.msra.mxu0 0.0
          %414 = vmatprep.subr.mxu0 0.0
          %415 = vmatpush1.xpose.msra.mxu0 0.0
          %416 = vmatprep.subr.mxu0 0.0
          %417 = vmatpush1.xpose.msra.mxu0 0.0
          %418 = vmatprep.subr.mxu0 0.0
          %419 = vmatpush1.xpose.msra.mxu0 0.0
          %420 = vmatprep.subr.mxu0 0.0
          %421 = vmatpush1.xpose.msra.mxu0 0.0
          %422 = vmatprep.subr.mxu0 0.0
          %423 = vmatpush1.xpose.msra.mxu0 0.0
          %424 = vmatprep.subr.mxu0 0.0
          %425 = vmatpush1.xpose.msra.mxu0 0.0
          %426 = vmatprep.subr.mxu0 0.0
          %427 = vmatpush1.xpose.msra.mxu0 0.0
          %428 = vmatprep.subr.mxu0 0.0
          %429 = vmatpush1.xpose.msra.mxu0 0.0
          %430 = vmatprep.mubr.f32.mxu0 0.0
          %431 = vmatmul.mubr.f32.gmra.mrb[0].mxu0 %v341
          %v432 = vpop.f32.mrb[0].mxu0
          %v433 = vadd.f32 %v364, %v432
          %v434 = vpop.f32.mrb[0].mxu0
          %435 = vmatprep.mubr.f32.mxu0 0.0
          %436 = vmatmul.mubr.f32.gmra.mrb[0].mxu0 %v342
          %v437 = vpop.f32.mrb[0].mxu0
          %v438 = vadd.f32 %v364, %v437
          %v439 = vpop.f32.mrb[0].mxu0
          %440 = vdwg.mxu0
          %v441 = vmul.f32 %v433, 0.5
          %v442 = vmul.f32 %v438, 0.5
          %v443 = vmul.f32 %v433, 0.70710677
          %v444 = vmul.f32 %v438, 0.70710677
          %v445 = verf.f32.pop %v443
          %v446 = verf.f32.pop %v444
          %v447 = vadd.f32 %v445, 1.0
          %v448 = vadd.f32 %v446, 1.0
          %v449 = vmul.f32 %v441, %v447
          %v450 = vmul.f32 %v442, %v448
          %451 = vadd.xlane.f32.xlu0 %v449
          %v452 = vpop.xlane.xlu0 %451
          %453 = vadd.xlane.f32.xlu0 %v450
          %v454 = vpop.xlane.xlu0 %453
          %v455 = vrcp.pop 128.0
          %v456 = vmul.f32 %v452, %v455
          %v457 = vmul.f32 %v454, %v455
          %v458 = vsub.f32 %v449, %v456
          %v459 = vsub.f32 %v450, %v457
          %v460 = vmul.f32 %v458, %v458
          %v461 = vmul.f32 %v459, %v459
          %462 = vadd.xlane.f32.xlu0 %v460
          %v463 = vpop.xlane.xlu0 %462
          %464 = vadd.xlane.f32.xlu0 %v461
          %v465 = vpop.xlane.xlu0 %464
          %v466 = vmul.f32 %v463, %v455
          %v467 = vmul.f32 %v465, %v455
          %v468 = vadd.f32 %v466, 1e-12
          %v469 = vadd.f32 %v467, 1e-12
          %v470 = vrsqrt.pop %v468
          %v471 = vrsqrt.pop %v469
          %v472 = vmul.f32 %v458, %v470
          %v473 = vmul.f32 %v459, %v471
          %v474 = vld [vmem:[%s3] sm:$0x1]
          %v476 = vlaneseq
          %v477 = vshrl.u32 %v476, 7
          %v478 = vsub.s32 0, %v477
          %v479 = vrot.slane %v474, %v478
          %v481 = vmul.f32 %v472, %v479
          %v482 = vmul.f32 %v473, %v479
          %v483 = vld [vmem:[%s4] sm:$0x1]
          %v485 = vlaneseq
          %v486 = vshrl.u32 %v485, 7
          %v487 = vsub.s32 0, %v486
          %v488 = vrot.slane %v483, %v487
          %v490 = vadd.f32 %v481, %v488
          %v491 = vadd.f32 %v482, %v488
          %492 = vst [vmem:[#allocation2] sm:$0xff] %v490
          %493 = vst [vmem:[#allocation2 + $0x8] sm:$0xff] %v491
        $region60: #{tpu_custom_call.1} parent=43 // pred_fallthru
          _
        %v494 = vld [vmem:[#allocation2] sm:$0xff]
        %v495 = vld [vmem:[#allocation2 + $0x8] sm:$0xff]
        %v496 = vld [vmem:[%s296] sm:$0xff]
        %v497 = vld [vmem:[%s296 + $0x8] sm:$0xff]
        %v498 = vld [vmem:[%s296 + $0x10] sm:$0xff]
        %v499 = vld [vmem:[%s296 + $0x18] sm:$0xff]
        %v500 = vld [vmem:[%s296 + $0x20] sm:$0xff]
        %v501 = vld [vmem:[%s296 + $0x28] sm:$0xff]
        %v502 = vld [vmem:[%s296 + $0x30] sm:$0xff]
        %v503 = vld [vmem:[%s296 + $0x38] sm:$0xff]
        %v504 = vld [vmem:[%s296 + $0x40] sm:$0xff]
        %v505 = vld [vmem:[%s296 + $0x48] sm:$0xff]
        %v506 = vld [vmem:[%s296 + $0x50] sm:$0xff]
        %v507 = vld [vmem:[%s296 + $0x58] sm:$0xff]
        %v508 = vld [vmem:[%s296 + $0x60] sm:$0xff]
        %v509 = vld [vmem:[%s296 + $0x68] sm:$0xff]
        %v510 = vld [vmem:[%s296 + $0x70] sm:$0xff]
        %v511 = vld [vmem:[%s296 + $0x78] sm:$0xff]
        %v512 = vld [vmem:[%s296 + $0x80] sm:$0xff]
        %v513 = vld [vmem:[%s296 + $0x88] sm:$0xff]
        %v514 = vld [vmem:[%s296 + $0x90] sm:$0xff]
        %v515 = vld [vmem:[%s296 + $0x98] sm:$0xff]
        %v516 = vld [vmem:[%s296 + $0xa0] sm:$0xff]
        %v517 = vld [vmem:[%s296 + $0xa8] sm:$0xff]
        %v518 = vld [vmem:[%s296 + $0xb0] sm:$0xff]
        %v519 = vld [vmem:[%s296 + $0xb8] sm:$0xff]
        %v520 = vld [vmem:[%s296 + $0xc0] sm:$0xff]
        %v521 = vld [vmem:[%s296 + $0xc8] sm:$0xff]
        %v522 = vld [vmem:[%s296 + $0xd0] sm:$0xff]
        %v523 = vld [vmem:[%s296 + $0xd8] sm:$0xff]
        %v524 = vld [vmem:[%s296 + $0xe0] sm:$0xff]
        %v525 = vld [vmem:[%s296 + $0xe8] sm:$0xff]
        %v526 = vld [vmem:[%s296 + $0xf0] sm:$0xff]
        %v527 = vld [vmem:[%s296 + $0xf8] sm:$0xff]
        %528 = vmatprep.subr.mxu0 0.0
        %529 = vmatpush1.xpose.msra.mxu0 %v496
        %530 = vmatprep.subr.mxu0 0.0
        %531 = vmatpush1.xpose.msra.mxu0 %v497
        %532 = vmatprep.subr.mxu0 0.0
        %533 = vmatpush1.xpose.msra.mxu0 %v498
        %534 = vmatprep.subr.mxu0 0.0
        %535 = vmatpush1.xpose.msra.mxu0 %v499
        %536 = vmatprep.subr.mxu0 0.0
        %537 = vmatpush1.xpose.msra.mxu0 %v500
        %538 = vmatprep.subr.mxu0 0.0
        %539 = vmatpush1.xpose.msra.mxu0 %v501
        %540 = vmatprep.subr.mxu0 0.0
        %541 = vmatpush1.xpose.msra.mxu0 %v502
        %542 = vmatprep.subr.mxu0 0.0
        %543 = vmatpush1.xpose.msra.mxu0 %v503
        %544 = vmatprep.subr.mxu0 0.0
        %545 = vmatpush1.xpose.msra.mxu0 %v504
        %546 = vmatprep.subr.mxu0 0.0
        %547 = vmatpush1.xpose.msra.mxu0 %v505
        %548 = vmatprep.subr.mxu0 0.0
        %549 = vmatpush1.xpose.msra.mxu0 %v506
        %550 = vmatprep.subr.mxu0 0.0
        %551 = vmatpush1.xpose.msra.mxu0 %v507
        %552 = vmatprep.subr.mxu0 0.0
        %553 = vmatpush1.xpose.msra.mxu0 %v508
        %554 = vmatprep.subr.mxu0 0.0
        %555 = vmatpush1.xpose.msra.mxu0 %v509
        %556 = vmatprep.subr.mxu0 0.0
        %557 = vmatpush1.xpose.msra.mxu0 %v510
        %558 = vmatprep.subr.mxu0 0.0
        %559 = vmatpush1.xpose.msra.mxu0 %v511
        %560 = vmatprep.subr.mxu0 0.0
        %561 = vmatpush1.xpose.msra.mxu0 %v512
        %562 = vmatprep.subr.mxu0 0.0
        %563 = vmatpush1.xpose.msra.mxu0 %v513
        %564 = vmatprep.subr.mxu0 0.0
        %565 = vmatpush1.xpose.msra.mxu0 %v514
        %566 = vmatprep.subr.mxu0 0.0
        %567 = vmatpush1.xpose.msra.mxu0 %v515
        %568 = vmatprep.subr.mxu0 0.0
        %569 = vmatpush1.xpose.msra.mxu0 %v516
        %570 = vmatprep.subr.mxu0 0.0
        %571 = vmatpush1.xpose.msra.mxu0 %v517
        %572 = vmatprep.subr.mxu0 0.0
        %573 = vmatpush1.xpose.msra.mxu0 %v518
        %574 = vmatprep.subr.mxu0 0.0
        %575 = vmatpush1.xpose.msra.mxu0 %v519
        %576 = vmatprep.subr.mxu0 0.0
        %577 = vmatpush1.xpose.msra.mxu0 %v520
        %578 = vmatprep.subr.mxu0 0.0
        %579 = vmatpush1.xpose.msra.mxu0 %v521
        %580 = vmatprep.subr.mxu0 0.0
        %581 = vmatpush1.xpose.msra.mxu0 %v522
        %582 = vmatprep.subr.mxu0 0.0
        %583 = vmatpush1.xpose.msra.mxu0 %v523
        %584 = vmatprep.subr.mxu0 0.0
        %585 = vmatpush1.xpose.msra.mxu0 %v524
        %586 = vmatprep.subr.mxu0 0.0
        %587 = vmatpush1.xpose.msra.mxu0 %v525
        %588 = vmatprep.subr.mxu0 0.0
        %589 = vmatpush1.xpose.msra.mxu0 %v526
        %590 = vmatprep.subr.mxu0 0.0
        %591 = vmatpush1.xpose.msra.mxu0 %v527
        %592 = vmatprep.mubr.f32.mxu0 0.0
        %593 = vmatmul.mubr.f32.gmra.mrb[0].mxu0 %v494
        %v594 = vpop.f32.mrb[0].mxu0
        %v595 = vadd.f32 0.0, %v594
        %v596 = vpop.f32.mrb[0].mxu0
        %v597 = vadd.f32 0.0, %v596
        %598 = vmatprep.mubr.f32.mxu0 0.0
        %599 = vmatmul.mubr.f32.gmra.mrb[0].mxu0 %v495
        %v600 = vpop.f32.mrb[0].mxu0
        %v601 = vadd.f32 0.0, %v600
        %v602 = vpop.f32.mrb[0].mxu0
        %v603 = vadd.f32 0.0, %v602
        %604 = vdwg.mxu0
        %605 = vst [vmem:[%s324] sm:$0xff] %v595
        %606 = vst [vmem:[%s324 + $0x8] sm:$0xff] %v597
        %607 = vst [vmem:[%s324 + $0x10] sm:$0xff] %v601
        %608 = vst [vmem:[%s324 + $0x18] sm:$0xff] %v603
        %s609 = sand.u32 %s180, 1
        %s610 = scalar_lea.sflag [#allocation5], %s609
        %s611 = sand.u32 %s180, 1
        %s612 = smul.addr %s611, 32
        %s613 = scalar_lea.vmem [#allocation9], %s612
        // Predicated region
        $region61: #{tpu_custom_call.1} parent=43 // pred_check
          %p614 = pneg %p190
        $region62: #{tpu_custom_call.1} parent=43 // pred_check_branch
          %616 = sbr.rel (%p614) target = $region64
        $region63: #{tpu_custom_call.1} parent=43 // pred_region
          %s617 = smul.u32 2, %s26
          %s618 = smul.u32 2, %s27
          %s619 = ssub.s32 5, %s618
          %p620 = scmp.lt.s32.totalorder %s619, 2
          %s621 = scalar_select %p620, %s619, 2
          %s622 = smul.u32 256, %s621
          %s624 = ssub.s32 512, %s622
          %625 = vsyncadd %s610, %s624
          %p626 = scmp.ne.s32.totalorder 0, %s622
          %s627 = smul.addr %s617, 5
          %s628 = sadd.s32 %s618, %s627
          %s629 = smul.addr %s628, 128
          %s630 = scalar_lea.hbm %s6, %s629
          %s631 = smul.u32 %s621, 8
          %s632 = smul.u32 %s631, 2
          %s633 = sshll.u32 %s613, 4
          %s634 = int_to_ptr.vmem [resolvable:$true] %s633
          %s635 = sshll.u32 %s632, 4
          %639 = dma.vmem_to_hbm [thread:$0]  (%p626), %s634, %s635, %s630, %s610, 256, 640, %s631
        $region64: #{tpu_custom_call.1} parent=43 // pred_fallthru
          _
      $region44: #{tpu_custom_call.1} parent=5 // pred_fallthru
        _
      %p640 = scmp.le.s32.totalorder 2, %s17
      // Predicated region
      $region65: #{tpu_custom_call.1} parent=5 // pred_check
        %p641 = pneg %p640
      $region66: #{tpu_custom_call.1} parent=5 // pred_check_branch
        %643 = sbr.rel (%p641) target = $region68
      $region67: #{tpu_custom_call.1} parent=5 // pred_region
        %s644 = ssub.s32 %s17, 2
        // Predicated region
        $region69: #{tpu_custom_call.1} parent=67 // pred_check
          %p645 = pneg %p196
        $region70: #{tpu_custom_call.1} parent=67 // pred_check_branch
          %647 = sbr.rel (%p645) target = $region72
        $region71: #{tpu_custom_call.1} parent=67 // pred_region
          %s648 = sand.u32 %s181, 1
          %s649 = scalar_lea.sflag [#allocation5], %s648
          %s650 = sand.u32 %s181, 1
          %s651 = smul.addr %s650, 32
          %s652 = scalar_lea.vmem [#allocation9], %s651
          %653 = dma.done %s649, 512
        $region72: #{tpu_custom_call.1} parent=67 // pred_fallthru
          _
      $region68: #{tpu_custom_call.1} parent=5 // pred_fallthru
        _
    $region6: #{tpu_custom_call.1} parent=1 // loop_footer
      %s21 = sadd.s32 1, %s17
    $region7: #{tpu_custom_call.1} parent=1 // loop_footer_branch
      %16 = sbr.rel target = $region3
    $region8: #{tpu_custom_call.1} parent=1 // loop_exit
      _
    %654 = vsyncpa [#allocation4], 1
    %s655 = scalar_lea.sflag [#allocation4], 1
    %656 = vsyncpa %s655, 1
    %657 = vsyncpa [#allocation7], 1
    %658 = vsyncpa [#allocation5], 1
    %s659 = scalar_lea.sflag [#allocation5], 1
    %660 = vsyncpa %s659, 1

</llo_original>
